<compile_context>
chip_gen: v7x
topology: tpu7x:2x2x1
jax: 0.10.0
libtpu: 0.0.40
codegen_flags: <defaults>
</compile_context>

<pallas_src>
from functools import partial

import jax
import jax.numpy as jnp
from jax.experimental import pallas as pl
from jax.experimental.pallas import tpu as pltpu

GROUP = 128          # points packed per row
LANES = 3 * GROUP    # 384 lanes: multiple of 128 -> dense vregs, unmasked stores


def _round_up(x, m):
    return ((x + m - 1) // m) * m


def _coef_table(m, lanes):
    """Per-lane mixing coefficients for lane shifts d = -2..+2 (rows 0..4).

    Lane l holds coordinate c = l % 3 of some point; the sheared value is
        out[l] = sum_d coef[d + 2, l] * p[l + d],
    with coef[d + 2, l] = m[c, c + d] if 0 <= c + d <= 2 else 0. The zeros
    also kill the wrap-around values produced by the lane rolls in the kernel.
    """
    z = jnp.zeros((), jnp.float32)
    rows = jnp.stack([
        jnp.stack([z,       z,       m[2, 0]]),   # d = -2
        jnp.stack([z,       m[1, 0], m[2, 1]]),   # d = -1
        jnp.stack([m[0, 0], m[1, 1], m[2, 2]]),   # d =  0
        jnp.stack([m[0, 1], m[1, 2], z      ]),   # d = +1
        jnp.stack([m[0, 2], z,       z      ]),   # d = +2
    ])                                             # (5, 3)
    return jnp.tile(rows, (1, lanes // 3))         # (5, lanes)


def shear_kernel(coef_ref, pts_ref, out_ref):
    """out[:, l] = sum_{d=-2..2} coef[d+2, l] * p[:, l+d]  (lane-local 3x3 mix)."""
    p = pts_ref[...]                   # (tile_r, LANES) lane-dense point slab
    c = coef_ref[...]                  # (5, LANES) coefficient table
    lanes = p.shape[-1]
    # A_d[l] = p[l + d] == roll(p, shift=-d) (jnp.roll convention); negative
    # shifts are expressed as positive shifts mod `lanes` (wrap values hit 0s).
    out_ref[...] = (
        c[2:3, :] * p                                        # d =  0
        + c[1:2, :] * pltpu.roll(p, 1, axis=1)               # d = -1
        + c[0:1, :] * pltpu.roll(p, 2, axis=1)               # d = -2
        + c[3:4, :] * pltpu.roll(p, lanes - 1, axis=1)       # d = +1
        + c[4:5, :] * pltpu.roll(p, lanes - 2, axis=1)       # d = +2
    )


@partial(jax.jit, static_argnames=("max_tile_rows",))
def random_shear(point_cloud, shear_matrix, *, max_tile_rows=512):
    """Returns point_cloud @ shear_matrix.T for a (N, 3) point cloud."""
    n, d = point_cloud.shape
    assert d == 3, "point cloud must be (N, 3)"
    dtype = point_cloud.dtype

    coef = _coef_table(shear_matrix.astype(jnp.float32), LANES).astype(dtype)

    # Lane-dense packed view: row r holds points [128r, 128r + 128) with xyz
    # interleaved along 384 lanes. Row-major reshapes are free; only ragged N
    # pays one pad copy here (and one slice on the way out).
    n_pad = _round_up(n, GROUP)
    rows = n_pad // GROUP
    flat = point_cloud.reshape(-1)
    if n_pad != n:
        flat = jnp.pad(flat, (0, (n_pad - n) * 3))
    packed = flat.reshape(rows, LANES)

    # Row tile: multiple of 8 (sublane granule), target ~8 grid steps for
    # pipeline overlap / v7x dual-core balance, cap at 512 rows (768 KiB block,
    # ~3 MiB double-buffered in+out -> safe on every generation's VMEM limit).
    if rows <= 8:
        tile_r = rows                       # single block (equals full dim)
    else:
        tile_r = min(max_tile_rows, max(8, _round_up(pl.cdiv(rows, 8), 8)))
    grid = (pl.cdiv(rows, tile_r),)

    out_packed = pl.pallas_call(
        shear_kernel,
        out_shape=jax.ShapeDtypeStruct((rows, LANES), dtype),
        grid=grid,
        in_specs=[
            pl.BlockSpec((5, LANES), lambda i: (0, 0)),        # resident coef table
            pl.BlockSpec((tile_r, LANES), lambda i: (i, 0)),   # point slab
        ],
        out_specs=pl.BlockSpec((tile_r, LANES), lambda i: (i, 0)),
        compiler_params=pltpu.CompilerParams(
            dimension_semantics=("parallel",)),
    )(coef, packed)

    out_flat = out_packed.reshape(-1)
    if n_pad != n:
        out_flat = out_flat[: 3 * n]
    return out_flat.reshape(n, 3)


def make_shear_matrix(key, max_shear=0.1):
    """Deterministic stand-in for torch.empty(6).uniform_(-max_shear, max_shear)."""
    sf = jax.random.uniform(key, (6,), minval=-max_shear, maxval=max_shear,
                            dtype=jnp.float32)
    return jnp.array([[1.0, sf[0], sf[1]],
                      [sf[2], 1.0, sf[3]],
                      [sf[4], sf[5], 1.0]], dtype=jnp.float32)


if __name__ == "__main__":
    key = jax.random.PRNGKey(0)
    k_mat, k_pts = jax.random.split(key)
    shear_matrix = make_shear_matrix(k_mat, max_shear=0.1)

    # 200: ragged N (pad + partial block); 1024: exact single block;
    # 2560: multi-step grid with a ragged trailing row-block.
    for n in (200, 1024, 2560):
        k_pts, k = jax.random.split(k_pts)
        pc = jax.random.normal(k, (n, 3), dtype=jnp.float32)

        out = jax.block_until_ready(random_shear(pc, shear_matrix))

        # Reference: point_cloud @ shear_matrix.T, written as exact f32 VPU math.
        ref = (pc[:, 0:1] * shear_matrix[:, 0]
               + pc[:, 1:2] * shear_matrix[:, 1]
               + pc[:, 2:3] * shear_matrix[:, 2])

        assert out.shape == (n, 3) and out.dtype == jnp.float32
        assert jnp.allclose(out, ref, atol=1e-5, rtol=1e-5), f"mismatch at N={n}"

    print("KERNEL_OK")
</pallas_src>

<mosaic_0001>
module attributes {stable_mosaic.version = 11 : i64} {
  func.func @shear_kernel(%arg0: i32, %arg1: memref<5x384xf32, #tpu.memory_space<vmem>>, %arg2: memref<2x384xf32, #tpu.memory_space<vmem>>, %arg3: memref<2x384xf32, #tpu.memory_space<vmem>>) attributes {dimension_semantics = [#tpu.dimension_semantics<parallel>], iteration_bounds = array<i64: 1>, scalar_prefetch = 0 : i64, scratch_operands = 0 : i64, tpu.core_type = #tpu.core_type<tc>, window_params = [{pipeline_mode = #tpu.pipeline_mode<synchronous>, transform_indices = @transform_0, window_bounds = array<i64: 5, 384>}, {transform_indices = @transform_1, window_bounds = array<i64: 2, 384>}, {transform_indices = @transform_2, window_bounds = array<i64: 2, 384>}]} {
    %c0 = arith.constant 0 : index
    %c0_0 = arith.constant 0 : index
    %0 = vector.load %arg2[%c0, %c0_0] : memref<2x384xf32, #tpu.memory_space<vmem>>, vector<2x384xf32>
    %c0_1 = arith.constant 0 : index
    %c0_2 = arith.constant 0 : index
    %1 = vector.load %arg1[%c0_1, %c0_2] : memref<5x384xf32, #tpu.memory_space<vmem>>, vector<5x384xf32>
    %2 = vector.extract_strided_slice %1 {offsets = [2, 0], sizes = [1, 384], strides = [1, 1]} : vector<5x384xf32> to vector<1x384xf32>
    %3 = vector.broadcast %2 : vector<1x384xf32> to vector<2x384xf32>
    %4 = arith.mulf %3, %0 : vector<2x384xf32>
    %5 = vector.extract_strided_slice %1 {offsets = [1, 0], sizes = [1, 384], strides = [1, 1]} : vector<5x384xf32> to vector<1x384xf32>
    %c1_i32 = arith.constant 1 : i32
    %6 = tpu.dynamic_rotate %0 by %c1_i32 dim 1 : vector<2x384xf32>, i32 -> vector<2x384xf32>
    %7 = vector.broadcast %5 : vector<1x384xf32> to vector<2x384xf32>
    %8 = arith.mulf %7, %6 : vector<2x384xf32>
    %9 = arith.addf %4, %8 : vector<2x384xf32>
    %10 = vector.extract_strided_slice %1 {offsets = [0, 0], sizes = [1, 384], strides = [1, 1]} : vector<5x384xf32> to vector<1x384xf32>
    %c2_i32 = arith.constant 2 : i32
    %11 = tpu.dynamic_rotate %0 by %c2_i32 dim 1 : vector<2x384xf32>, i32 -> vector<2x384xf32>
    %12 = vector.broadcast %10 : vector<1x384xf32> to vector<2x384xf32>
    %13 = arith.mulf %12, %11 : vector<2x384xf32>
    %14 = arith.addf %9, %13 : vector<2x384xf32>
    %15 = vector.extract_strided_slice %1 {offsets = [3, 0], sizes = [1, 384], strides = [1, 1]} : vector<5x384xf32> to vector<1x384xf32>
    %c383_i32 = arith.constant 383 : i32
    %16 = tpu.dynamic_rotate %0 by %c383_i32 dim 1 : vector<2x384xf32>, i32 -> vector<2x384xf32>
    %17 = vector.broadcast %15 : vector<1x384xf32> to vector<2x384xf32>
    %18 = arith.mulf %17, %16 : vector<2x384xf32>
    %19 = arith.addf %14, %18 : vector<2x384xf32>
    %20 = vector.extract_strided_slice %1 {offsets = [4, 0], sizes = [1, 384], strides = [1, 1]} : vector<5x384xf32> to vector<1x384xf32>
    %c382_i32 = arith.constant 382 : i32
    %21 = tpu.dynamic_rotate %0 by %c382_i32 dim 1 : vector<2x384xf32>, i32 -> vector<2x384xf32>
    %22 = vector.broadcast %20 : vector<1x384xf32> to vector<2x384xf32>
    %23 = arith.mulf %22, %21 : vector<2x384xf32>
    %24 = arith.addf %19, %23 : vector<2x384xf32>
    %c0_3 = arith.constant 0 : index
    %c0_4 = arith.constant 0 : index
    %25 = vector.load %arg3[%c0_3, %c0_4] : memref<2x384xf32, #tpu.memory_space<vmem>>, vector<2x384xf32>
    tpu.vector_store %arg3[%c0_3, %c0_4], %24 {strides = array<i32>} : memref<2x384xf32, #tpu.memory_space<vmem>>, vector<2x384xf32>,
    return
  }
  func.func @transform_0(%arg0: i32) -> (i32, i32) {
    %c0_i32 = arith.constant 0 : i32
    %c0_i32_0 = arith.constant 0 : i32
    %c0_i32_1 = arith.constant 0 : i32
    return %c0_i32, %c0_i32_0 : i32, i32
  }
  func.func @transform_1(%arg0: i32) -> (i32, i32) {
    %c0_i32 = arith.constant 0 : i32
    %c0_i32_0 = arith.constant 0 : i32
    return %arg0, %c0_i32 : i32, i32
  }
  func.func @transform_2(%arg0: i32) -> (i32, i32) {
    %c0_i32 = arith.constant 0 : i32
    %c0_i32_0 = arith.constant 0 : i32
    return %arg0, %c0_i32 : i32, i32
  }
}

</mosaic_0001>

<llo_original>
// kernel: tile.9
$region0: #{tile.9}
  %s0 = inlined_call_operand.vmem [shape: f32[5,128,3], index: 0, kind: input, shape index: {}]
  %s1 = inlined_call_operand.vmem [shape: f32[5,384], index: 1, kind: output, shape index: {}]
  %v2 = vld [vmem:[%s0] sm:$0x1]
  %s3 = scalar_lea.vmem %s0, 127
  %v4 = vld [vmem:[%s3] sm:$0x2]
  %vm5 = vcmask 1041409
  %v6 = vsel %vm5, %v4, %v2
  %s7 = scalar_lea.vmem %s0, 254
  %v8 = vld [vmem:[%s7] sm:$0x4]
  %vm9 = vcmask 1042434
  %v10 = vsel %vm9, %v8, %v6
  %s11 = scalar_lea.vmem %s0, 381
  %v12 = vld [vmem:[%s11] sm:$0x8]
  %vm13 = vcmask 1043459
  %v14 = vsel %vm13, %v12, %v10
  %s15 = scalar_lea.vmem %s0, 508
  %v16 = vld [vmem:[%s15] sm:$0x10]
  %vm17 = vcmask 1044484
  %v18 = vsel %vm17, %v16, %v14
  %vm19 = vcmask 23552
  %20 = vst.msk [vmem:[%s1] sm:$0x1f] %vm19, %v18
  %s21 = scalar_lea.vmem %s0, 85
  %v22 = vld [vmem:[%s21] sm:$0x1]
  %s23 = scalar_lea.vmem %s0, 212
  %v24 = vld [vmem:[%s23] sm:$0x2]
  %vm25 = vcmask 1041409
  %v26 = vsel %vm25, %v24, %v22
  %s27 = scalar_lea.vmem %s0, 339
  %v28 = vld [vmem:[%s27] sm:$0x4]
  %vm29 = vcmask 1042434
  %v30 = vsel %vm29, %v28, %v26
  %s31 = scalar_lea.vmem %s0, 466
  %v32 = vld [vmem:[%s31] sm:$0x8]
  %vm33 = vcmask 1043459
  %v34 = vsel %vm33, %v32, %v30
  %s35 = scalar_lea.vmem %s0, 593
  %v36 = vld [vmem:[%s35] sm:$0x10]
  %vm37 = vcmask 1044484
  %v38 = vsel %vm37, %v36, %v34
  %s39 = scalar_lea.vmem %s0, 85
  %v40 = vld [vmem:[%s39] sm:$0x1]
  %s41 = scalar_lea.vmem %s0, 212
  %v42 = vld [vmem:[%s41] sm:$0x2]
  %vm43 = vcmask 1041409
  %v44 = vsel %vm43, %v42, %v40
  %s45 = scalar_lea.vmem %s0, 339
  %v46 = vld [vmem:[%s45] sm:$0x4]
  %vm47 = vcmask 1042434
  %v48 = vsel %vm47, %v46, %v44
  %s49 = scalar_lea.vmem %s0, 466
  %v50 = vld [vmem:[%s49] sm:$0x8]
  %vm51 = vcmask 1043459
  %v52 = vsel %vm51, %v50, %v48
  %s53 = scalar_lea.vmem %s0, 593
  %v54 = vld [vmem:[%s53] sm:$0x10]
  %vm55 = vcmask 1044484
  %v56 = vsel %vm55, %v54, %v52
  %vm57 = vcmask 7168
  %v58 = vsel %vm57, %v56, %v38
  %59 = vrot.lane.b32.xlu0 %v58, 127
  %v60 = vpop.permute.xlu0 %59
  %vm61 = vcmask 15360
  %s62 = scalar_lea.vmem %s1, 16
  %63 = vst.msk [vmem:[%s62] sm:$0x1f] %vm61, %v60
  %vm64 = vcmask 1048568
  %s65 = scalar_lea.vmem %s1, 8
  %66 = vst.msk [vmem:[%s65] sm:$0x1f] %vm64, %v60
  %s67 = scalar_lea.vmem %s0, 42
  %v68 = vld [vmem:[%s67] sm:$0x1]
  %s69 = scalar_lea.vmem %s0, 169
  %v70 = vld [vmem:[%s69] sm:$0x2]
  %vm71 = vcmask 1041409
  %v72 = vsel %vm71, %v70, %v68
  %s73 = scalar_lea.vmem %s0, 296
  %v74 = vld [vmem:[%s73] sm:$0x4]
  %vm75 = vcmask 1042434
  %v76 = vsel %vm75, %v74, %v72
  %s77 = scalar_lea.vmem %s0, 423
  %v78 = vld [vmem:[%s77] sm:$0x8]
  %vm79 = vcmask 1043459
  %v80 = vsel %vm79, %v78, %v76
  %s81 = scalar_lea.vmem %s0, 550
  %v82 = vld [vmem:[%s81] sm:$0x10]
  %vm83 = vcmask 1044484
  %v84 = vsel %vm83, %v82, %v80
  %s85 = scalar_lea.vmem %s0, 42
  %v86 = vld [vmem:[%s85] sm:$0x1]
  %s87 = scalar_lea.vmem %s0, 169
  %v88 = vld [vmem:[%s87] sm:$0x2]
  %vm89 = vcmask 1041409
  %v90 = vsel %vm89, %v88, %v86
  %s91 = scalar_lea.vmem %s0, 296
  %v92 = vld [vmem:[%s91] sm:$0x4]
  %vm93 = vcmask 1042434
  %v94 = vsel %vm93, %v92, %v90
  %s95 = scalar_lea.vmem %s0, 423
  %v96 = vld [vmem:[%s95] sm:$0x8]
  %vm97 = vcmask 1043459
  %v98 = vsel %vm97, %v96, %v94
  %s99 = scalar_lea.vmem %s0, 550
  %v100 = vld [vmem:[%s99] sm:$0x10]
  %vm101 = vcmask 1044484
  %v102 = vsel %vm101, %v100, %v98
  %vm103 = vcmask 15360
  %v104 = vsel %vm103, %v102, %v84
  %105 = vrot.lane.b32.xlu0 %v104, 126
  %v106 = vpop.permute.xlu0 %105
  %vm107 = vcmask 7168
  %s108 = scalar_lea.vmem %s1, 8
  %109 = vst.msk [vmem:[%s108] sm:$0x1f] %vm107, %v106
  %vm110 = vcmask 1048560
  %111 = vst.msk [vmem:[%s1] sm:$0x1f] %vm110, %v106
  %s112 = scalar_lea.vmem %s0, 127
  %v113 = vld [vmem:[%s112] sm:$0x1]
  %s114 = scalar_lea.vmem %s0, 254
  %v115 = vld [vmem:[%s114] sm:$0x2]
  %vm116 = vcmask 1041409
  %v117 = vsel %vm116, %v115, %v113
  %s118 = scalar_lea.vmem %s0, 381
  %v119 = vld [vmem:[%s118] sm:$0x4]
  %vm120 = vcmask 1042434
  %v121 = vsel %vm120, %v119, %v117
  %s122 = scalar_lea.vmem %s0, 508
  %v123 = vld [vmem:[%s122] sm:$0x8]
  %vm124 = vcmask 1043459
  %v125 = vsel %vm124, %v123, %v121
  %s126 = scalar_lea.vmem %s0, 635
  %v127 = vld [vmem:[%s126] sm:$0x10]
  %vm128 = vcmask 1044484
  %v129 = vsel %vm128, %v127, %v125
  %130 = vrot.lane.b32.xlu0 %v129, 125
  %v131 = vpop.permute.xlu0 %130
  %vm132 = vcmask 1048552
  %s133 = scalar_lea.vmem %s1, 16
  %134 = vst.msk [vmem:[%s133] sm:$0x1f] %vm132, %v131
  %s135 = scalar_lea.vmem %s0, 84
  %v136 = vld [vmem:[%s135] sm:$0x1]
  %s137 = scalar_lea.vmem %s0, 211
  %v138 = vld [vmem:[%s137] sm:$0x2]
  %vm139 = vcmask 1041409
  %v140 = vsel %vm139, %v138, %v136
  %s141 = scalar_lea.vmem %s0, 338
  %v142 = vld [vmem:[%s141] sm:$0x4]
  %vm143 = vcmask 1042434
  %v144 = vsel %vm143, %v142, %v140
  %s145 = scalar_lea.vmem %s0, 465
  %v146 = vld [vmem:[%s145] sm:$0x8]
  %vm147 = vcmask 1043459
  %v148 = vsel %vm147, %v146, %v144
  %s149 = scalar_lea.vmem %s0, 592
  %v150 = vld [vmem:[%s149] sm:$0x10]
  %vm151 = vcmask 1044484
  %v152 = vsel %vm151, %v150, %v148
  %153 = vrot.lane.b32.xlu0 %v152, 124
  %v154 = vpop.permute.xlu0 %153
  %vm155 = vcmask 1040352
  %s156 = scalar_lea.vmem %s1, 8
  %157 = vst.msk [vmem:[%s156] sm:$0x1f] %vm155, %v154
  %s158 = scalar_lea.vmem %s0, 41
  %v159 = vld [vmem:[%s158] sm:$0x1]
  %s160 = scalar_lea.vmem %s0, 168
  %v161 = vld [vmem:[%s160] sm:$0x2]
  %vm162 = vcmask 1041409
  %v163 = vsel %vm162, %v161, %v159
  %s164 = scalar_lea.vmem %s0, 295
  %v165 = vld [vmem:[%s164] sm:$0x4]
  %vm166 = vcmask 1042434
  %v167 = vsel %vm166, %v165, %v163
  %s168 = scalar_lea.vmem %s0, 422
  %v169 = vld [vmem:[%s168] sm:$0x8]
  %vm170 = vcmask 1043459
  %v171 = vsel %vm170, %v169, %v167
  %s172 = scalar_lea.vmem %s0, 549
  %v173 = vld [vmem:[%s172] sm:$0x10]
  %vm174 = vcmask 1044484
  %v175 = vsel %vm174, %v173, %v171
  %176 = vrot.lane.b32.xlu0 %v175, 123
  %v177 = vpop.permute.xlu0 %176
  %vm178 = vcmask 1032152
  %179 = vst.msk [vmem:[%s1] sm:$0x1f] %vm178, %v177
  %s180 = scalar_lea.vmem %s0, 126
  %v181 = vld [vmem:[%s180] sm:$0x1]
  %s182 = scalar_lea.vmem %s0, 253
  %v183 = vld [vmem:[%s182] sm:$0x2]
  %vm184 = vcmask 1041409
  %v185 = vsel %vm184, %v183, %v181
  %s186 = scalar_lea.vmem %s0, 380
  %v187 = vld [vmem:[%s186] sm:$0x4]
  %vm188 = vcmask 1042434
  %v189 = vsel %vm188, %v187, %v185
  %s190 = scalar_lea.vmem %s0, 507
  %v191 = vld [vmem:[%s190] sm:$0x8]
  %vm192 = vcmask 1043459
  %v193 = vsel %vm192, %v191, %v189
  %s194 = scalar_lea.vmem %s0, 634
  %v195 = vld [vmem:[%s194] sm:$0x10]
  %vm196 = vcmask 1044484
  %v197 = vsel %vm196, %v195, %v193
  %198 = vrot.lane.b32.xlu0 %v197, 122
  %v199 = vpop.permute.xlu0 %198
  %vm200 = vcmask 1023952
  %s201 = scalar_lea.vmem %s1, 16
  %202 = vst.msk [vmem:[%s201] sm:$0x1f] %vm200, %v199
  %s203 = scalar_lea.vmem %s0, 83
  %v204 = vld [vmem:[%s203] sm:$0x1]
  %s205 = scalar_lea.vmem %s0, 210
  %v206 = vld [vmem:[%s205] sm:$0x2]
  %vm207 = vcmask 1041409
  %v208 = vsel %vm207, %v206, %v204
  %s209 = scalar_lea.vmem %s0, 337
  %v210 = vld [vmem:[%s209] sm:$0x4]
  %vm211 = vcmask 1042434
  %v212 = vsel %vm211, %v210, %v208
  %s213 = scalar_lea.vmem %s0, 464
  %v214 = vld [vmem:[%s213] sm:$0x8]
  %vm215 = vcmask 1043459
  %v216 = vsel %vm215, %v214, %v212
  %s217 = scalar_lea.vmem %s0, 591
  %v218 = vld [vmem:[%s217] sm:$0x10]
  %vm219 = vcmask 1044484
  %v220 = vsel %vm219, %v218, %v216
  %221 = vrot.lane.b32.xlu0 %v220, 121
  %v222 = vpop.permute.xlu0 %221
  %vm223 = vcmask 1015752
  %s224 = scalar_lea.vmem %s1, 8
  %225 = vst.msk [vmem:[%s224] sm:$0x1f] %vm223, %v222
  %s226 = scalar_lea.vmem %s0, 40
  %v227 = vld [vmem:[%s226] sm:$0x1]
  %s228 = scalar_lea.vmem %s0, 167
  %v229 = vld [vmem:[%s228] sm:$0x2]
  %vm230 = vcmask 1041409
  %v231 = vsel %vm230, %v229, %v227
  %s232 = scalar_lea.vmem %s0, 294
  %v233 = vld [vmem:[%s232] sm:$0x4]
  %vm234 = vcmask 1042434
  %v235 = vsel %vm234, %v233, %v231
  %s236 = scalar_lea.vmem %s0, 421
  %v237 = vld [vmem:[%s236] sm:$0x8]
  %vm238 = vcmask 1043459
  %v239 = vsel %vm238, %v237, %v235
  %s240 = scalar_lea.vmem %s0, 548
  %v241 = vld [vmem:[%s240] sm:$0x10]
  %vm242 = vcmask 1044484
  %v243 = vsel %vm242, %v241, %v239
  %244 = vrot.lane.b32.xlu0 %v243, 120
  %v245 = vpop.permute.xlu0 %244
  %vm246 = vcmask 1007552
  %247 = vst.msk [vmem:[%s1] sm:$0x1f] %vm246, %v245
  %s248 = scalar_lea.vmem %s0, 125
  %v249 = vld [vmem:[%s248] sm:$0x1]
  %s250 = scalar_lea.vmem %s0, 252
  %v251 = vld [vmem:[%s250] sm:$0x2]
  %vm252 = vcmask 1041409
  %v253 = vsel %vm252, %v251, %v249
  %s254 = scalar_lea.vmem %s0, 379
  %v255 = vld [vmem:[%s254] sm:$0x4]
  %vm256 = vcmask 1042434
  %v257 = vsel %vm256, %v255, %v253
  %s258 = scalar_lea.vmem %s0, 506
  %v259 = vld [vmem:[%s258] sm:$0x8]
  %vm260 = vcmask 1043459
  %v261 = vsel %vm260, %v259, %v257
  %s262 = scalar_lea.vmem %s0, 633
  %v263 = vld [vmem:[%s262] sm:$0x10]
  %vm264 = vcmask 1044484
  %v265 = vsel %vm264, %v263, %v261
  %266 = vrot.lane.b32.xlu0 %v265, 119
  %v267 = vpop.permute.xlu0 %266
  %vm268 = vcmask 999352
  %s269 = scalar_lea.vmem %s1, 16
  %270 = vst.msk [vmem:[%s269] sm:$0x1f] %vm268, %v267
  %s271 = scalar_lea.vmem %s0, 82
  %v272 = vld [vmem:[%s271] sm:$0x1]
  %s273 = scalar_lea.vmem %s0, 209
  %v274 = vld [vmem:[%s273] sm:$0x2]
  %vm275 = vcmask 1041409
  %v276 = vsel %vm275, %v274, %v272
  %s277 = scalar_lea.vmem %s0, 336
  %v278 = vld [vmem:[%s277] sm:$0x4]
  %vm279 = vcmask 1042434
  %v280 = vsel %vm279, %v278, %v276
  %s281 = scalar_lea.vmem %s0, 463
  %v282 = vld [vmem:[%s281] sm:$0x8]
  %vm283 = vcmask 1043459
  %v284 = vsel %vm283, %v282, %v280
  %s285 = scalar_lea.vmem %s0, 590
  %v286 = vld [vmem:[%s285] sm:$0x10]
  %vm287 = vcmask 1044484
  %v288 = vsel %vm287, %v286, %v284
  %289 = vrot.lane.b32.xlu0 %v288, 118
  %v290 = vpop.permute.xlu0 %289
  %vm291 = vcmask 991152
  %s292 = scalar_lea.vmem %s1, 8
  %293 = vst.msk [vmem:[%s292] sm:$0x1f] %vm291, %v290
  %s294 = scalar_lea.vmem %s0, 39
  %v295 = vld [vmem:[%s294] sm:$0x1]
  %s296 = scalar_lea.vmem %s0, 166
  %v297 = vld [vmem:[%s296] sm:$0x2]
  %vm298 = vcmask 1041409
  %v299 = vsel %vm298, %v297, %v295
  %s300 = scalar_lea.vmem %s0, 293
  %v301 = vld [vmem:[%s300] sm:$0x4]
  %vm302 = vcmask 1042434
  %v303 = vsel %vm302, %v301, %v299
  %s304 = scalar_lea.vmem %s0, 420
  %v305 = vld [vmem:[%s304] sm:$0x8]
  %vm306 = vcmask 1043459
  %v307 = vsel %vm306, %v305, %v303
  %s308 = scalar_lea.vmem %s0, 547
  %v309 = vld [vmem:[%s308] sm:$0x10]
  %vm310 = vcmask 1044484
  %v311 = vsel %vm310, %v309, %v307
  %312 = vrot.lane.b32.xlu0 %v311, 117
  %v313 = vpop.permute.xlu0 %312
  %vm314 = vcmask 982952
  %315 = vst.msk [vmem:[%s1] sm:$0x1f] %vm314, %v313
  %s316 = scalar_lea.vmem %s0, 124
  %v317 = vld [vmem:[%s316] sm:$0x1]
  %s318 = scalar_lea.vmem %s0, 251
  %v319 = vld [vmem:[%s318] sm:$0x2]
  %vm320 = vcmask 1041409
  %v321 = vsel %vm320, %v319, %v317
  %s322 = scalar_lea.vmem %s0, 378
  %v323 = vld [vmem:[%s322] sm:$0x4]
  %vm324 = vcmask 1042434
  %v325 = vsel %vm324, %v323, %v321
  %s326 = scalar_lea.vmem %s0, 505
  %v327 = vld [vmem:[%s326] sm:$0x8]
  %vm328 = vcmask 1043459
  %v329 = vsel %vm328, %v327, %v325
  %s330 = scalar_lea.vmem %s0, 632
  %v331 = vld [vmem:[%s330] sm:$0x10]
  %vm332 = vcmask 1044484
  %v333 = vsel %vm332, %v331, %v329
  %334 = vrot.lane.b32.xlu0 %v333, 116
  %v335 = vpop.permute.xlu0 %334
  %vm336 = vcmask 974752
  %s337 = scalar_lea.vmem %s1, 16
  %338 = vst.msk [vmem:[%s337] sm:$0x1f] %vm336, %v335
  %s339 = scalar_lea.vmem %s0, 81
  %v340 = vld [vmem:[%s339] sm:$0x1]
  %s341 = scalar_lea.vmem %s0, 208
  %v342 = vld [vmem:[%s341] sm:$0x2]
  %vm343 = vcmask 1041409
  %v344 = vsel %vm343, %v342, %v340
  %s345 = scalar_lea.vmem %s0, 335
  %v346 = vld [vmem:[%s345] sm:$0x4]
  %vm347 = vcmask 1042434
  %v348 = vsel %vm347, %v346, %v344
  %s349 = scalar_lea.vmem %s0, 462
  %v350 = vld [vmem:[%s349] sm:$0x8]
  %vm351 = vcmask 1043459
  %v352 = vsel %vm351, %v350, %v348
  %s353 = scalar_lea.vmem %s0, 589
  %v354 = vld [vmem:[%s353] sm:$0x10]
  %vm355 = vcmask 1044484
  %v356 = vsel %vm355, %v354, %v352
  %357 = vrot.lane.b32.xlu0 %v356, 115
  %v358 = vpop.permute.xlu0 %357
  %vm359 = vcmask 966552
  %s360 = scalar_lea.vmem %s1, 8
  %361 = vst.msk [vmem:[%s360] sm:$0x1f] %vm359, %v358
  %s362 = scalar_lea.vmem %s0, 38
  %v363 = vld [vmem:[%s362] sm:$0x1]
  %s364 = scalar_lea.vmem %s0, 165
  %v365 = vld [vmem:[%s364] sm:$0x2]
  %vm366 = vcmask 1041409
  %v367 = vsel %vm366, %v365, %v363
  %s368 = scalar_lea.vmem %s0, 292
  %v369 = vld [vmem:[%s368] sm:$0x4]
  %vm370 = vcmask 1042434
  %v371 = vsel %vm370, %v369, %v367
  %s372 = scalar_lea.vmem %s0, 419
  %v373 = vld [vmem:[%s372] sm:$0x8]
  %vm374 = vcmask 1043459
  %v375 = vsel %vm374, %v373, %v371
  %s376 = scalar_lea.vmem %s0, 546
  %v377 = vld [vmem:[%s376] sm:$0x10]
  %vm378 = vcmask 1044484
  %v379 = vsel %vm378, %v377, %v375
  %380 = vrot.lane.b32.xlu0 %v379, 114
  %v381 = vpop.permute.xlu0 %380
  %vm382 = vcmask 958352
  %383 = vst.msk [vmem:[%s1] sm:$0x1f] %vm382, %v381
  %s384 = scalar_lea.vmem %s0, 123
  %v385 = vld [vmem:[%s384] sm:$0x1]
  %s386 = scalar_lea.vmem %s0, 250
  %v387 = vld [vmem:[%s386] sm:$0x2]
  %vm388 = vcmask 1041409
  %v389 = vsel %vm388, %v387, %v385
  %s390 = scalar_lea.vmem %s0, 377
  %v391 = vld [vmem:[%s390] sm:$0x4]
  %vm392 = vcmask 1042434
  %v393 = vsel %vm392, %v391, %v389
  %s394 = scalar_lea.vmem %s0, 504
  %v395 = vld [vmem:[%s394] sm:$0x8]
  %vm396 = vcmask 1043459
  %v397 = vsel %vm396, %v395, %v393
  %s398 = scalar_lea.vmem %s0, 631
  %v399 = vld [vmem:[%s398] sm:$0x10]
  %vm400 = vcmask 1044484
  %v401 = vsel %vm400, %v399, %v397
  %402 = vrot.lane.b32.xlu0 %v401, 113
  %v403 = vpop.permute.xlu0 %402
  %vm404 = vcmask 950152
  %s405 = scalar_lea.vmem %s1, 16
  %406 = vst.msk [vmem:[%s405] sm:$0x1f] %vm404, %v403
  %s407 = scalar_lea.vmem %s0, 80
  %v408 = vld [vmem:[%s407] sm:$0x1]
  %s409 = scalar_lea.vmem %s0, 207
  %v410 = vld [vmem:[%s409] sm:$0x2]
  %vm411 = vcmask 1041409
  %v412 = vsel %vm411, %v410, %v408
  %s413 = scalar_lea.vmem %s0, 334
  %v414 = vld [vmem:[%s413] sm:$0x4]
  %vm415 = vcmask 1042434
  %v416 = vsel %vm415, %v414, %v412
  %s417 = scalar_lea.vmem %s0, 461
  %v418 = vld [vmem:[%s417] sm:$0x8]
  %vm419 = vcmask 1043459
  %v420 = vsel %vm419, %v418, %v416
  %s421 = scalar_lea.vmem %s0, 588
  %v422 = vld [vmem:[%s421] sm:$0x10]
  %vm423 = vcmask 1044484
  %v424 = vsel %vm423, %v422, %v420
  %425 = vrot.lane.b32.xlu0 %v424, 112
  %v426 = vpop.permute.xlu0 %425
  %vm427 = vcmask 941952
  %s428 = scalar_lea.vmem %s1, 8
  %429 = vst.msk [vmem:[%s428] sm:$0x1f] %vm427, %v426
  %s430 = scalar_lea.vmem %s0, 37
  %v431 = vld [vmem:[%s430] sm:$0x1]
  %s432 = scalar_lea.vmem %s0, 164
  %v433 = vld [vmem:[%s432] sm:$0x2]
  %vm434 = vcmask 1041409
  %v435 = vsel %vm434, %v433, %v431
  %s436 = scalar_lea.vmem %s0, 291
  %v437 = vld [vmem:[%s436] sm:$0x4]
  %vm438 = vcmask 1042434
  %v439 = vsel %vm438, %v437, %v435
  %s440 = scalar_lea.vmem %s0, 418
  %v441 = vld [vmem:[%s440] sm:$0x8]
  %vm442 = vcmask 1043459
  %v443 = vsel %vm442, %v441, %v439
  %s444 = scalar_lea.vmem %s0, 545
  %v445 = vld [vmem:[%s444] sm:$0x10]
  %vm446 = vcmask 1044484
  %v447 = vsel %vm446, %v445, %v443
  %448 = vrot.lane.b32.xlu0 %v447, 111
  %v449 = vpop.permute.xlu0 %448
  %vm450 = vcmask 933752
  %451 = vst.msk [vmem:[%s1] sm:$0x1f] %vm450, %v449
  %s452 = scalar_lea.vmem %s0, 122
  %v453 = vld [vmem:[%s452] sm:$0x1]
  %s454 = scalar_lea.vmem %s0, 249
  %v455 = vld [vmem:[%s454] sm:$0x2]
  %vm456 = vcmask 1041409
  %v457 = vsel %vm456, %v455, %v453
  %s458 = scalar_lea.vmem %s0, 376
  %v459 = vld [vmem:[%s458] sm:$0x4]
  %vm460 = vcmask 1042434
  %v461 = vsel %vm460, %v459, %v457
  %s462 = scalar_lea.vmem %s0, 503
  %v463 = vld [vmem:[%s462] sm:$0x8]
  %vm464 = vcmask 1043459
  %v465 = vsel %vm464, %v463, %v461
  %s466 = scalar_lea.vmem %s0, 630
  %v467 = vld [vmem:[%s466] sm:$0x10]
  %vm468 = vcmask 1044484
  %v469 = vsel %vm468, %v467, %v465
  %470 = vrot.lane.b32.xlu0 %v469, 110
  %v471 = vpop.permute.xlu0 %470
  %vm472 = vcmask 925552
  %s473 = scalar_lea.vmem %s1, 16
  %474 = vst.msk [vmem:[%s473] sm:$0x1f] %vm472, %v471
  %s475 = scalar_lea.vmem %s0, 79
  %v476 = vld [vmem:[%s475] sm:$0x1]
  %s477 = scalar_lea.vmem %s0, 206
  %v478 = vld [vmem:[%s477] sm:$0x2]
  %vm479 = vcmask 1041409
  %v480 = vsel %vm479, %v478, %v476
  %s481 = scalar_lea.vmem %s0, 333
  %v482 = vld [vmem:[%s481] sm:$0x4]
  %vm483 = vcmask 1042434
  %v484 = vsel %vm483, %v482, %v480
  %s485 = scalar_lea.vmem %s0, 460
  %v486 = vld [vmem:[%s485] sm:$0x8]
  %vm487 = vcmask 1043459
  %v488 = vsel %vm487, %v486, %v484
  %s489 = scalar_lea.vmem %s0, 587
  %v490 = vld [vmem:[%s489] sm:$0x10]
  %vm491 = vcmask 1044484
  %v492 = vsel %vm491, %v490, %v488
  %493 = vrot.lane.b32.xlu0 %v492, 109
  %v494 = vpop.permute.xlu0 %493
  %vm495 = vcmask 917352
  %s496 = scalar_lea.vmem %s1, 8
  %497 = vst.msk [vmem:[%s496] sm:$0x1f] %vm495, %v494
  %s498 = scalar_lea.vmem %s0, 36
  %v499 = vld [vmem:[%s498] sm:$0x1]
  %s500 = scalar_lea.vmem %s0, 163
  %v501 = vld [vmem:[%s500] sm:$0x2]
  %vm502 = vcmask 1041409
  %v503 = vsel %vm502, %v501, %v499
  %s504 = scalar_lea.vmem %s0, 290
  %v505 = vld [vmem:[%s504] sm:$0x4]
  %vm506 = vcmask 1042434
  %v507 = vsel %vm506, %v505, %v503
  %s508 = scalar_lea.vmem %s0, 417
  %v509 = vld [vmem:[%s508] sm:$0x8]
  %vm510 = vcmask 1043459
  %v511 = vsel %vm510, %v509, %v507
  %s512 = scalar_lea.vmem %s0, 544
  %v513 = vld [vmem:[%s512] sm:$0x10]
  %vm514 = vcmask 1044484
  %v515 = vsel %vm514, %v513, %v511
  %516 = vrot.lane.b32.xlu0 %v515, 108
  %v517 = vpop.permute.xlu0 %516
  %vm518 = vcmask 909152
  %519 = vst.msk [vmem:[%s1] sm:$0x1f] %vm518, %v517
  %s520 = scalar_lea.vmem %s0, 121
  %v521 = vld [vmem:[%s520] sm:$0x1]
  %s522 = scalar_lea.vmem %s0, 248
  %v523 = vld [vmem:[%s522] sm:$0x2]
  %vm524 = vcmask 1041409
  %v525 = vsel %vm524, %v523, %v521
  %s526 = scalar_lea.vmem %s0, 375
  %v527 = vld [vmem:[%s526] sm:$0x4]
  %vm528 = vcmask 1042434
  %v529 = vsel %vm528, %v527, %v525
  %s530 = scalar_lea.vmem %s0, 502
  %v531 = vld [vmem:[%s530] sm:$0x8]
  %vm532 = vcmask 1043459
  %v533 = vsel %vm532, %v531, %v529
  %s534 = scalar_lea.vmem %s0, 629
  %v535 = vld [vmem:[%s534] sm:$0x10]
  %vm536 = vcmask 1044484
  %v537 = vsel %vm536, %v535, %v533
  %538 = vrot.lane.b32.xlu0 %v537, 107
  %v539 = vpop.permute.xlu0 %538
  %vm540 = vcmask 900952
  %s541 = scalar_lea.vmem %s1, 16
  %542 = vst.msk [vmem:[%s541] sm:$0x1f] %vm540, %v539
  %s543 = scalar_lea.vmem %s0, 78
  %v544 = vld [vmem:[%s543] sm:$0x1]
  %s545 = scalar_lea.vmem %s0, 205
  %v546 = vld [vmem:[%s545] sm:$0x2]
  %vm547 = vcmask 1041409
  %v548 = vsel %vm547, %v546, %v544
  %s549 = scalar_lea.vmem %s0, 332
  %v550 = vld [vmem:[%s549] sm:$0x4]
  %vm551 = vcmask 1042434
  %v552 = vsel %vm551, %v550, %v548
  %s553 = scalar_lea.vmem %s0, 459
  %v554 = vld [vmem:[%s553] sm:$0x8]
  %vm555 = vcmask 1043459
  %v556 = vsel %vm555, %v554, %v552
  %s557 = scalar_lea.vmem %s0, 586
  %v558 = vld [vmem:[%s557] sm:$0x10]
  %vm559 = vcmask 1044484
  %v560 = vsel %vm559, %v558, %v556
  %561 = vrot.lane.b32.xlu0 %v560, 106
  %v562 = vpop.permute.xlu0 %561
  %vm563 = vcmask 892752
  %s564 = scalar_lea.vmem %s1, 8
  %565 = vst.msk [vmem:[%s564] sm:$0x1f] %vm563, %v562
  %s566 = scalar_lea.vmem %s0, 35
  %v567 = vld [vmem:[%s566] sm:$0x1]
  %s568 = scalar_lea.vmem %s0, 162
  %v569 = vld [vmem:[%s568] sm:$0x2]
  %vm570 = vcmask 1041409
  %v571 = vsel %vm570, %v569, %v567
  %s572 = scalar_lea.vmem %s0, 289
  %v573 = vld [vmem:[%s572] sm:$0x4]
  %vm574 = vcmask 1042434
  %v575 = vsel %vm574, %v573, %v571
  %s576 = scalar_lea.vmem %s0, 416
  %v577 = vld [vmem:[%s576] sm:$0x8]
  %vm578 = vcmask 1043459
  %v579 = vsel %vm578, %v577, %v575
  %s580 = scalar_lea.vmem %s0, 543
  %v581 = vld [vmem:[%s580] sm:$0x10]
  %vm582 = vcmask 1044484
  %v583 = vsel %vm582, %v581, %v579
  %584 = vrot.lane.b32.xlu0 %v583, 105
  %v585 = vpop.permute.xlu0 %584
  %vm586 = vcmask 884552
  %587 = vst.msk [vmem:[%s1] sm:$0x1f] %vm586, %v585
  %s588 = scalar_lea.vmem %s0, 120
  %v589 = vld [vmem:[%s588] sm:$0x1]
  %s590 = scalar_lea.vmem %s0, 247
  %v591 = vld [vmem:[%s590] sm:$0x2]
  %vm592 = vcmask 1041409
  %v593 = vsel %vm592, %v591, %v589
  %s594 = scalar_lea.vmem %s0, 374
  %v595 = vld [vmem:[%s594] sm:$0x4]
  %vm596 = vcmask 1042434
  %v597 = vsel %vm596, %v595, %v593
  %s598 = scalar_lea.vmem %s0, 501
  %v599 = vld [vmem:[%s598] sm:$0x8]
  %vm600 = vcmask 1043459
  %v601 = vsel %vm600, %v599, %v597
  %s602 = scalar_lea.vmem %s0, 628
  %v603 = vld [vmem:[%s602] sm:$0x10]
  %vm604 = vcmask 1044484
  %v605 = vsel %vm604, %v603, %v601
  %606 = vrot.lane.b32.xlu0 %v605, 104
  %v607 = vpop.permute.xlu0 %606
  %vm608 = vcmask 876352
  %s609 = scalar_lea.vmem %s1, 16
  %610 = vst.msk [vmem:[%s609] sm:$0x1f] %vm608, %v607
  %s611 = scalar_lea.vmem %s0, 77
  %v612 = vld [vmem:[%s611] sm:$0x1]
  %s613 = scalar_lea.vmem %s0, 204
  %v614 = vld [vmem:[%s613] sm:$0x2]
  %vm615 = vcmask 1041409
  %v616 = vsel %vm615, %v614, %v612
  %s617 = scalar_lea.vmem %s0, 331
  %v618 = vld [vmem:[%s617] sm:$0x4]
  %vm619 = vcmask 1042434
  %v620 = vsel %vm619, %v618, %v616
  %s621 = scalar_lea.vmem %s0, 458
  %v622 = vld [vmem:[%s621] sm:$0x8]
  %vm623 = vcmask 1043459
  %v624 = vsel %vm623, %v622, %v620
  %s625 = scalar_lea.vmem %s0, 585
  %v626 = vld [vmem:[%s625] sm:$0x10]
  %vm627 = vcmask 1044484
  %v628 = vsel %vm627, %v626, %v624
  %629 = vrot.lane.b32.xlu0 %v628, 103
  %v630 = vpop.permute.xlu0 %629
  %vm631 = vcmask 868152
  %s632 = scalar_lea.vmem %s1, 8
  %633 = vst.msk [vmem:[%s632] sm:$0x1f] %vm631, %v630
  %s634 = scalar_lea.vmem %s0, 34
  %v635 = vld [vmem:[%s634] sm:$0x1]
  %s636 = scalar_lea.vmem %s0, 161
  %v637 = vld [vmem:[%s636] sm:$0x2]
  %vm638 = vcmask 1041409
  %v639 = vsel %vm638, %v637, %v635
  %s640 = scalar_lea.vmem %s0, 288
  %v641 = vld [vmem:[%s640] sm:$0x4]
  %vm642 = vcmask 1042434
  %v643 = vsel %vm642, %v641, %v639
  %s644 = scalar_lea.vmem %s0, 415
  %v645 = vld [vmem:[%s644] sm:$0x8]
  %vm646 = vcmask 1043459
  %v647 = vsel %vm646, %v645, %v643
  %s648 = scalar_lea.vmem %s0, 542
  %v649 = vld [vmem:[%s648] sm:$0x10]
  %vm650 = vcmask 1044484
  %v651 = vsel %vm650, %v649, %v647
  %652 = vrot.lane.b32.xlu0 %v651, 102
  %v653 = vpop.permute.xlu0 %652
  %vm654 = vcmask 859952
  %655 = vst.msk [vmem:[%s1] sm:$0x1f] %vm654, %v653
  %s656 = scalar_lea.vmem %s0, 119
  %v657 = vld [vmem:[%s656] sm:$0x1]
  %s658 = scalar_lea.vmem %s0, 246
  %v659 = vld [vmem:[%s658] sm:$0x2]
  %vm660 = vcmask 1041409
  %v661 = vsel %vm660, %v659, %v657
  %s662 = scalar_lea.vmem %s0, 373
  %v663 = vld [vmem:[%s662] sm:$0x4]
  %vm664 = vcmask 1042434
  %v665 = vsel %vm664, %v663, %v661
  %s666 = scalar_lea.vmem %s0, 500
  %v667 = vld [vmem:[%s666] sm:$0x8]
  %vm668 = vcmask 1043459
  %v669 = vsel %vm668, %v667, %v665
  %s670 = scalar_lea.vmem %s0, 627
  %v671 = vld [vmem:[%s670] sm:$0x10]
  %vm672 = vcmask 1044484
  %v673 = vsel %vm672, %v671, %v669
  %674 = vrot.lane.b32.xlu0 %v673, 101
  %v675 = vpop.permute.xlu0 %674
  %vm676 = vcmask 851752
  %s677 = scalar_lea.vmem %s1, 16
  %678 = vst.msk [vmem:[%s677] sm:$0x1f] %vm676, %v675
  %s679 = scalar_lea.vmem %s0, 76
  %v680 = vld [vmem:[%s679] sm:$0x1]
  %s681 = scalar_lea.vmem %s0, 203
  %v682 = vld [vmem:[%s681] sm:$0x2]
  %vm683 = vcmask 1041409
  %v684 = vsel %vm683, %v682, %v680
  %s685 = scalar_lea.vmem %s0, 330
  %v686 = vld [vmem:[%s685] sm:$0x4]
  %vm687 = vcmask 1042434
  %v688 = vsel %vm687, %v686, %v684
  %s689 = scalar_lea.vmem %s0, 457
  %v690 = vld [vmem:[%s689] sm:$0x8]
  %vm691 = vcmask 1043459
  %v692 = vsel %vm691, %v690, %v688
  %s693 = scalar_lea.vmem %s0, 584
  %v694 = vld [vmem:[%s693] sm:$0x10]
  %vm695 = vcmask 1044484
  %v696 = vsel %vm695, %v694, %v692
  %697 = vrot.lane.b32.xlu0 %v696, 100
  %v698 = vpop.permute.xlu0 %697
  %vm699 = vcmask 843552
  %s700 = scalar_lea.vmem %s1, 8
  %701 = vst.msk [vmem:[%s700] sm:$0x1f] %vm699, %v698
  %s702 = scalar_lea.vmem %s0, 33
  %v703 = vld [vmem:[%s702] sm:$0x1]
  %s704 = scalar_lea.vmem %s0, 160
  %v705 = vld [vmem:[%s704] sm:$0x2]
  %vm706 = vcmask 1041409
  %v707 = vsel %vm706, %v705, %v703
  %s708 = scalar_lea.vmem %s0, 287
  %v709 = vld [vmem:[%s708] sm:$0x4]
  %vm710 = vcmask 1042434
  %v711 = vsel %vm710, %v709, %v707
  %s712 = scalar_lea.vmem %s0, 414
  %v713 = vld [vmem:[%s712] sm:$0x8]
  %vm714 = vcmask 1043459
  %v715 = vsel %vm714, %v713, %v711
  %s716 = scalar_lea.vmem %s0, 541
  %v717 = vld [vmem:[%s716] sm:$0x10]
  %vm718 = vcmask 1044484
  %v719 = vsel %vm718, %v717, %v715
  %720 = vrot.lane.b32.xlu0 %v719, 99
  %v721 = vpop.permute.xlu0 %720
  %vm722 = vcmask 835352
  %723 = vst.msk [vmem:[%s1] sm:$0x1f] %vm722, %v721
  %s724 = scalar_lea.vmem %s0, 118
  %v725 = vld [vmem:[%s724] sm:$0x1]
  %s726 = scalar_lea.vmem %s0, 245
  %v727 = vld [vmem:[%s726] sm:$0x2]
  %vm728 = vcmask 1041409
  %v729 = vsel %vm728, %v727, %v725
  %s730 = scalar_lea.vmem %s0, 372
  %v731 = vld [vmem:[%s730] sm:$0x4]
  %vm732 = vcmask 1042434
  %v733 = vsel %vm732, %v731, %v729
  %s734 = scalar_lea.vmem %s0, 499
  %v735 = vld [vmem:[%s734] sm:$0x8]
  %vm736 = vcmask 1043459
  %v737 = vsel %vm736, %v735, %v733
  %s738 = scalar_lea.vmem %s0, 626
  %v739 = vld [vmem:[%s738] sm:$0x10]
  %vm740 = vcmask 1044484
  %v741 = vsel %vm740, %v739, %v737
  %742 = vrot.lane.b32.xlu0 %v741, 98
  %v743 = vpop.permute.xlu0 %742
  %vm744 = vcmask 827152
  %s745 = scalar_lea.vmem %s1, 16
  %746 = vst.msk [vmem:[%s745] sm:$0x1f] %vm744, %v743
  %s747 = scalar_lea.vmem %s0, 75
  %v748 = vld [vmem:[%s747] sm:$0x1]
  %s749 = scalar_lea.vmem %s0, 202
  %v750 = vld [vmem:[%s749] sm:$0x2]
  %vm751 = vcmask 1041409
  %v752 = vsel %vm751, %v750, %v748
  %s753 = scalar_lea.vmem %s0, 329
  %v754 = vld [vmem:[%s753] sm:$0x4]
  %vm755 = vcmask 1042434
  %v756 = vsel %vm755, %v754, %v752
  %s757 = scalar_lea.vmem %s0, 456
  %v758 = vld [vmem:[%s757] sm:$0x8]
  %vm759 = vcmask 1043459
  %v760 = vsel %vm759, %v758, %v756
  %s761 = scalar_lea.vmem %s0, 583
  %v762 = vld [vmem:[%s761] sm:$0x10]
  %vm763 = vcmask 1044484
  %v764 = vsel %vm763, %v762, %v760
  %765 = vrot.lane.b32.xlu0 %v764, 97
  %v766 = vpop.permute.xlu0 %765
  %vm767 = vcmask 818952
  %s768 = scalar_lea.vmem %s1, 8
  %769 = vst.msk [vmem:[%s768] sm:$0x1f] %vm767, %v766
  %s770 = scalar_lea.vmem %s0, 32
  %v771 = vld [vmem:[%s770] sm:$0x1]
  %s772 = scalar_lea.vmem %s0, 159
  %v773 = vld [vmem:[%s772] sm:$0x2]
  %vm774 = vcmask 1041409
  %v775 = vsel %vm774, %v773, %v771
  %s776 = scalar_lea.vmem %s0, 286
  %v777 = vld [vmem:[%s776] sm:$0x4]
  %vm778 = vcmask 1042434
  %v779 = vsel %vm778, %v777, %v775
  %s780 = scalar_lea.vmem %s0, 413
  %v781 = vld [vmem:[%s780] sm:$0x8]
  %vm782 = vcmask 1043459
  %v783 = vsel %vm782, %v781, %v779
  %s784 = scalar_lea.vmem %s0, 540
  %v785 = vld [vmem:[%s784] sm:$0x10]
  %vm786 = vcmask 1044484
  %v787 = vsel %vm786, %v785, %v783
  %788 = vrot.lane.b32.xlu0 %v787, 96
  %v789 = vpop.permute.xlu0 %788
  %vm790 = vcmask 810752
  %791 = vst.msk [vmem:[%s1] sm:$0x1f] %vm790, %v789
  %s792 = scalar_lea.vmem %s0, 117
  %v793 = vld [vmem:[%s792] sm:$0x1]
  %s794 = scalar_lea.vmem %s0, 244
  %v795 = vld [vmem:[%s794] sm:$0x2]
  %vm796 = vcmask 1041409
  %v797 = vsel %vm796, %v795, %v793
  %s798 = scalar_lea.vmem %s0, 371
  %v799 = vld [vmem:[%s798] sm:$0x4]
  %vm800 = vcmask 1042434
  %v801 = vsel %vm800, %v799, %v797
  %s802 = scalar_lea.vmem %s0, 498
  %v803 = vld [vmem:[%s802] sm:$0x8]
  %vm804 = vcmask 1043459
  %v805 = vsel %vm804, %v803, %v801
  %s806 = scalar_lea.vmem %s0, 625
  %v807 = vld [vmem:[%s806] sm:$0x10]
  %vm808 = vcmask 1044484
  %v809 = vsel %vm808, %v807, %v805
  %810 = vrot.lane.b32.xlu0 %v809, 95
  %v811 = vpop.permute.xlu0 %810
  %vm812 = vcmask 802552
  %s813 = scalar_lea.vmem %s1, 16
  %814 = vst.msk [vmem:[%s813] sm:$0x1f] %vm812, %v811
  %s815 = scalar_lea.vmem %s0, 74
  %v816 = vld [vmem:[%s815] sm:$0x1]
  %s817 = scalar_lea.vmem %s0, 201
  %v818 = vld [vmem:[%s817] sm:$0x2]
  %vm819 = vcmask 1041409
  %v820 = vsel %vm819, %v818, %v816
  %s821 = scalar_lea.vmem %s0, 328
  %v822 = vld [vmem:[%s821] sm:$0x4]
  %vm823 = vcmask 1042434
  %v824 = vsel %vm823, %v822, %v820
  %s825 = scalar_lea.vmem %s0, 455
  %v826 = vld [vmem:[%s825] sm:$0x8]
  %vm827 = vcmask 1043459
  %v828 = vsel %vm827, %v826, %v824
  %s829 = scalar_lea.vmem %s0, 582
  %v830 = vld [vmem:[%s829] sm:$0x10]
  %vm831 = vcmask 1044484
  %v832 = vsel %vm831, %v830, %v828
  %833 = vrot.lane.b32.xlu0 %v832, 94
  %v834 = vpop.permute.xlu0 %833
  %vm835 = vcmask 794352
  %s836 = scalar_lea.vmem %s1, 8
  %837 = vst.msk [vmem:[%s836] sm:$0x1f] %vm835, %v834
  %s838 = scalar_lea.vmem %s0, 31
  %v839 = vld [vmem:[%s838] sm:$0x1]
  %s840 = scalar_lea.vmem %s0, 158
  %v841 = vld [vmem:[%s840] sm:$0x2]
  %vm842 = vcmask 1041409
  %v843 = vsel %vm842, %v841, %v839
  %s844 = scalar_lea.vmem %s0, 285
  %v845 = vld [vmem:[%s844] sm:$0x4]
  %vm846 = vcmask 1042434
  %v847 = vsel %vm846, %v845, %v843
  %s848 = scalar_lea.vmem %s0, 412
  %v849 = vld [vmem:[%s848] sm:$0x8]
  %vm850 = vcmask 1043459
  %v851 = vsel %vm850, %v849, %v847
  %s852 = scalar_lea.vmem %s0, 539
  %v853 = vld [vmem:[%s852] sm:$0x10]
  %vm854 = vcmask 1044484
  %v855 = vsel %vm854, %v853, %v851
  %856 = vrot.lane.b32.xlu0 %v855, 93
  %v857 = vpop.permute.xlu0 %856
  %vm858 = vcmask 786152
  %859 = vst.msk [vmem:[%s1] sm:$0x1f] %vm858, %v857
  %s860 = scalar_lea.vmem %s0, 116
  %v861 = vld [vmem:[%s860] sm:$0x1]
  %s862 = scalar_lea.vmem %s0, 243
  %v863 = vld [vmem:[%s862] sm:$0x2]
  %vm864 = vcmask 1041409
  %v865 = vsel %vm864, %v863, %v861
  %s866 = scalar_lea.vmem %s0, 370
  %v867 = vld [vmem:[%s866] sm:$0x4]
  %vm868 = vcmask 1042434
  %v869 = vsel %vm868, %v867, %v865
  %s870 = scalar_lea.vmem %s0, 497
  %v871 = vld [vmem:[%s870] sm:$0x8]
  %vm872 = vcmask 1043459
  %v873 = vsel %vm872, %v871, %v869
  %s874 = scalar_lea.vmem %s0, 624
  %v875 = vld [vmem:[%s874] sm:$0x10]
  %vm876 = vcmask 1044484
  %v877 = vsel %vm876, %v875, %v873
  %878 = vrot.lane.b32.xlu0 %v877, 92
  %v879 = vpop.permute.xlu0 %878
  %vm880 = vcmask 777952
  %s881 = scalar_lea.vmem %s1, 16
  %882 = vst.msk [vmem:[%s881] sm:$0x1f] %vm880, %v879
  %s883 = scalar_lea.vmem %s0, 73
  %v884 = vld [vmem:[%s883] sm:$0x1]
  %s885 = scalar_lea.vmem %s0, 200
  %v886 = vld [vmem:[%s885] sm:$0x2]
  %vm887 = vcmask 1041409
  %v888 = vsel %vm887, %v886, %v884
  %s889 = scalar_lea.vmem %s0, 327
  %v890 = vld [vmem:[%s889] sm:$0x4]
  %vm891 = vcmask 1042434
  %v892 = vsel %vm891, %v890, %v888
  %s893 = scalar_lea.vmem %s0, 454
  %v894 = vld [vmem:[%s893] sm:$0x8]
  %vm895 = vcmask 1043459
  %v896 = vsel %vm895, %v894, %v892
  %s897 = scalar_lea.vmem %s0, 581
  %v898 = vld [vmem:[%s897] sm:$0x10]
  %vm899 = vcmask 1044484
  %v900 = vsel %vm899, %v898, %v896
  %901 = vrot.lane.b32.xlu0 %v900, 91
  %v902 = vpop.permute.xlu0 %901
  %vm903 = vcmask 769752
  %s904 = scalar_lea.vmem %s1, 8
  %905 = vst.msk [vmem:[%s904] sm:$0x1f] %vm903, %v902
  %s906 = scalar_lea.vmem %s0, 30
  %v907 = vld [vmem:[%s906] sm:$0x1]
  %s908 = scalar_lea.vmem %s0, 157
  %v909 = vld [vmem:[%s908] sm:$0x2]
  %vm910 = vcmask 1041409
  %v911 = vsel %vm910, %v909, %v907
  %s912 = scalar_lea.vmem %s0, 284
  %v913 = vld [vmem:[%s912] sm:$0x4]
  %vm914 = vcmask 1042434
  %v915 = vsel %vm914, %v913, %v911
  %s916 = scalar_lea.vmem %s0, 411
  %v917 = vld [vmem:[%s916] sm:$0x8]
  %vm918 = vcmask 1043459
  %v919 = vsel %vm918, %v917, %v915
  %s920 = scalar_lea.vmem %s0, 538
  %v921 = vld [vmem:[%s920] sm:$0x10]
  %vm922 = vcmask 1044484
  %v923 = vsel %vm922, %v921, %v919
  %924 = vrot.lane.b32.xlu0 %v923, 90
  %v925 = vpop.permute.xlu0 %924
  %vm926 = vcmask 761552
  %927 = vst.msk [vmem:[%s1] sm:$0x1f] %vm926, %v925
  %s928 = scalar_lea.vmem %s0, 115
  %v929 = vld [vmem:[%s928] sm:$0x1]
  %s930 = scalar_lea.vmem %s0, 242
  %v931 = vld [vmem:[%s930] sm:$0x2]
  %vm932 = vcmask 1041409
  %v933 = vsel %vm932, %v931, %v929
  %s934 = scalar_lea.vmem %s0, 369
  %v935 = vld [vmem:[%s934] sm:$0x4]
  %vm936 = vcmask 1042434
  %v937 = vsel %vm936, %v935, %v933
  %s938 = scalar_lea.vmem %s0, 496
  %v939 = vld [vmem:[%s938] sm:$0x8]
  %vm940 = vcmask 1043459
  %v941 = vsel %vm940, %v939, %v937
  %s942 = scalar_lea.vmem %s0, 623
  %v943 = vld [vmem:[%s942] sm:$0x10]
  %vm944 = vcmask 1044484
  %v945 = vsel %vm944, %v943, %v941
  %946 = vrot.lane.b32.xlu0 %v945, 89
  %v947 = vpop.permute.xlu0 %946
  %vm948 = vcmask 753352
  %s949 = scalar_lea.vmem %s1, 16
  %950 = vst.msk [vmem:[%s949] sm:$0x1f] %vm948, %v947
  %s951 = scalar_lea.vmem %s0, 72
  %v952 = vld [vmem:[%s951] sm:$0x1]
  %s953 = scalar_lea.vmem %s0, 199
  %v954 = vld [vmem:[%s953] sm:$0x2]
  %vm955 = vcmask 1041409
  %v956 = vsel %vm955, %v954, %v952
  %s957 = scalar_lea.vmem %s0, 326
  %v958 = vld [vmem:[%s957] sm:$0x4]
  %vm959 = vcmask 1042434
  %v960 = vsel %vm959, %v958, %v956
  %s961 = scalar_lea.vmem %s0, 453
  %v962 = vld [vmem:[%s961] sm:$0x8]
  %vm963 = vcmask 1043459
  %v964 = vsel %vm963, %v962, %v960
  %s965 = scalar_lea.vmem %s0, 580
  %v966 = vld [vmem:[%s965] sm:$0x10]
  %vm967 = vcmask 1044484
  %v968 = vsel %vm967, %v966, %v964
  %969 = vrot.lane.b32.xlu0 %v968, 88
  %v970 = vpop.permute.xlu0 %969
  %vm971 = vcmask 745152
  %s972 = scalar_lea.vmem %s1, 8
  %973 = vst.msk [vmem:[%s972] sm:$0x1f] %vm971, %v970
  %s974 = scalar_lea.vmem %s0, 29
  %v975 = vld [vmem:[%s974] sm:$0x1]
  %s976 = scalar_lea.vmem %s0, 156
  %v977 = vld [vmem:[%s976] sm:$0x2]
  %vm978 = vcmask 1041409
  %v979 = vsel %vm978, %v977, %v975
  %s980 = scalar_lea.vmem %s0, 283
  %v981 = vld [vmem:[%s980] sm:$0x4]
  %vm982 = vcmask 1042434
  %v983 = vsel %vm982, %v981, %v979
  %s984 = scalar_lea.vmem %s0, 410
  %v985 = vld [vmem:[%s984] sm:$0x8]
  %vm986 = vcmask 1043459
  %v987 = vsel %vm986, %v985, %v983
  %s988 = scalar_lea.vmem %s0, 537
  %v989 = vld [vmem:[%s988] sm:$0x10]
  %vm990 = vcmask 1044484
  %v991 = vsel %vm990, %v989, %v987
  %992 = vrot.lane.b32.xlu0 %v991, 87
  %v993 = vpop.permute.xlu0 %992
  %vm994 = vcmask 736952
  %995 = vst.msk [vmem:[%s1] sm:$0x1f] %vm994, %v993
  %s996 = scalar_lea.vmem %s0, 114
  %v997 = vld [vmem:[%s996] sm:$0x1]
  %s998 = scalar_lea.vmem %s0, 241
  %v999 = vld [vmem:[%s998] sm:$0x2]
  %vm1000 = vcmask 1041409
  %v1001 = vsel %vm1000, %v999, %v997
  %s1002 = scalar_lea.vmem %s0, 368
  %v1003 = vld [vmem:[%s1002] sm:$0x4]
  %vm1004 = vcmask 1042434
  %v1005 = vsel %vm1004, %v1003, %v1001
  %s1006 = scalar_lea.vmem %s0, 495
  %v1007 = vld [vmem:[%s1006] sm:$0x8]
  %vm1008 = vcmask 1043459
  %v1009 = vsel %vm1008, %v1007, %v1005
  %s1010 = scalar_lea.vmem %s0, 622
  %v1011 = vld [vmem:[%s1010] sm:$0x10]
  %vm1012 = vcmask 1044484
  %v1013 = vsel %vm1012, %v1011, %v1009
  %1014 = vrot.lane.b32.xlu0 %v1013, 86
  %v1015 = vpop.permute.xlu0 %1014
  %vm1016 = vcmask 728752
  %s1017 = scalar_lea.vmem %s1, 16
  %1018 = vst.msk [vmem:[%s1017] sm:$0x1f] %vm1016, %v1015
  %s1019 = scalar_lea.vmem %s0, 71
  %v1020 = vld [vmem:[%s1019] sm:$0x1]
  %s1021 = scalar_lea.vmem %s0, 198
  %v1022 = vld [vmem:[%s1021] sm:$0x2]
  %vm1023 = vcmask 1041409
  %v1024 = vsel %vm1023, %v1022, %v1020
  %s1025 = scalar_lea.vmem %s0, 325
  %v1026 = vld [vmem:[%s1025] sm:$0x4]
  %vm1027 = vcmask 1042434
  %v1028 = vsel %vm1027, %v1026, %v1024
  %s1029 = scalar_lea.vmem %s0, 452
  %v1030 = vld [vmem:[%s1029] sm:$0x8]
  %vm1031 = vcmask 1043459
  %v1032 = vsel %vm1031, %v1030, %v1028
  %s1033 = scalar_lea.vmem %s0, 579
  %v1034 = vld [vmem:[%s1033] sm:$0x10]
  %vm1035 = vcmask 1044484
  %v1036 = vsel %vm1035, %v1034, %v1032
  %1037 = vrot.lane.b32.xlu0 %v1036, 85
  %v1038 = vpop.permute.xlu0 %1037
  %vm1039 = vcmask 720552
  %s1040 = scalar_lea.vmem %s1, 8
  %1041 = vst.msk [vmem:[%s1040] sm:$0x1f] %vm1039, %v1038
  %s1042 = scalar_lea.vmem %s0, 28
  %v1043 = vld [vmem:[%s1042] sm:$0x1]
  %s1044 = scalar_lea.vmem %s0, 155
  %v1045 = vld [vmem:[%s1044] sm:$0x2]
  %vm1046 = vcmask 1041409
  %v1047 = vsel %vm1046, %v1045, %v1043
  %s1048 = scalar_lea.vmem %s0, 282
  %v1049 = vld [vmem:[%s1048] sm:$0x4]
  %vm1050 = vcmask 1042434
  %v1051 = vsel %vm1050, %v1049, %v1047
  %s1052 = scalar_lea.vmem %s0, 409
  %v1053 = vld [vmem:[%s1052] sm:$0x8]
  %vm1054 = vcmask 1043459
  %v1055 = vsel %vm1054, %v1053, %v1051
  %s1056 = scalar_lea.vmem %s0, 536
  %v1057 = vld [vmem:[%s1056] sm:$0x10]
  %vm1058 = vcmask 1044484
  %v1059 = vsel %vm1058, %v1057, %v1055
  %1060 = vrot.lane.b32.xlu0 %v1059, 84
  %v1061 = vpop.permute.xlu0 %1060
  %vm1062 = vcmask 712352
  %1063 = vst.msk [vmem:[%s1] sm:$0x1f] %vm1062, %v1061
  %s1064 = scalar_lea.vmem %s0, 113
  %v1065 = vld [vmem:[%s1064] sm:$0x1]
  %s1066 = scalar_lea.vmem %s0, 240
  %v1067 = vld [vmem:[%s1066] sm:$0x2]
  %vm1068 = vcmask 1041409
  %v1069 = vsel %vm1068, %v1067, %v1065
  %s1070 = scalar_lea.vmem %s0, 367
  %v1071 = vld [vmem:[%s1070] sm:$0x4]
  %vm1072 = vcmask 1042434
  %v1073 = vsel %vm1072, %v1071, %v1069
  %s1074 = scalar_lea.vmem %s0, 494
  %v1075 = vld [vmem:[%s1074] sm:$0x8]
  %vm1076 = vcmask 1043459
  %v1077 = vsel %vm1076, %v1075, %v1073
  %s1078 = scalar_lea.vmem %s0, 621
  %v1079 = vld [vmem:[%s1078] sm:$0x10]
  %vm1080 = vcmask 1044484
  %v1081 = vsel %vm1080, %v1079, %v1077
  %1082 = vrot.lane.b32.xlu0 %v1081, 83
  %v1083 = vpop.permute.xlu0 %1082
  %vm1084 = vcmask 704152
  %s1085 = scalar_lea.vmem %s1, 16
  %1086 = vst.msk [vmem:[%s1085] sm:$0x1f] %vm1084, %v1083
  %s1087 = scalar_lea.vmem %s0, 70
  %v1088 = vld [vmem:[%s1087] sm:$0x1]
  %s1089 = scalar_lea.vmem %s0, 197
  %v1090 = vld [vmem:[%s1089] sm:$0x2]
  %vm1091 = vcmask 1041409
  %v1092 = vsel %vm1091, %v1090, %v1088
  %s1093 = scalar_lea.vmem %s0, 324
  %v1094 = vld [vmem:[%s1093] sm:$0x4]
  %vm1095 = vcmask 1042434
  %v1096 = vsel %vm1095, %v1094, %v1092
  %s1097 = scalar_lea.vmem %s0, 451
  %v1098 = vld [vmem:[%s1097] sm:$0x8]
  %vm1099 = vcmask 1043459
  %v1100 = vsel %vm1099, %v1098, %v1096
  %s1101 = scalar_lea.vmem %s0, 578
  %v1102 = vld [vmem:[%s1101] sm:$0x10]
  %vm1103 = vcmask 1044484
  %v1104 = vsel %vm1103, %v1102, %v1100
  %1105 = vrot.lane.b32.xlu0 %v1104, 82
  %v1106 = vpop.permute.xlu0 %1105
  %vm1107 = vcmask 695952
  %s1108 = scalar_lea.vmem %s1, 8
  %1109 = vst.msk [vmem:[%s1108] sm:$0x1f] %vm1107, %v1106
  %s1110 = scalar_lea.vmem %s0, 27
  %v1111 = vld [vmem:[%s1110] sm:$0x1]
  %s1112 = scalar_lea.vmem %s0, 154
  %v1113 = vld [vmem:[%s1112] sm:$0x2]
  %vm1114 = vcmask 1041409
  %v1115 = vsel %vm1114, %v1113, %v1111
  %s1116 = scalar_lea.vmem %s0, 281
  %v1117 = vld [vmem:[%s1116] sm:$0x4]
  %vm1118 = vcmask 1042434
  %v1119 = vsel %vm1118, %v1117, %v1115
  %s1120 = scalar_lea.vmem %s0, 408
  %v1121 = vld [vmem:[%s1120] sm:$0x8]
  %vm1122 = vcmask 1043459
  %v1123 = vsel %vm1122, %v1121, %v1119
  %s1124 = scalar_lea.vmem %s0, 535
  %v1125 = vld [vmem:[%s1124] sm:$0x10]
  %vm1126 = vcmask 1044484
  %v1127 = vsel %vm1126, %v1125, %v1123
  %1128 = vrot.lane.b32.xlu0 %v1127, 81
  %v1129 = vpop.permute.xlu0 %1128
  %vm1130 = vcmask 687752
  %1131 = vst.msk [vmem:[%s1] sm:$0x1f] %vm1130, %v1129
  %s1132 = scalar_lea.vmem %s0, 112
  %v1133 = vld [vmem:[%s1132] sm:$0x1]
  %s1134 = scalar_lea.vmem %s0, 239
  %v1135 = vld [vmem:[%s1134] sm:$0x2]
  %vm1136 = vcmask 1041409
  %v1137 = vsel %vm1136, %v1135, %v1133
  %s1138 = scalar_lea.vmem %s0, 366
  %v1139 = vld [vmem:[%s1138] sm:$0x4]
  %vm1140 = vcmask 1042434
  %v1141 = vsel %vm1140, %v1139, %v1137
  %s1142 = scalar_lea.vmem %s0, 493
  %v1143 = vld [vmem:[%s1142] sm:$0x8]
  %vm1144 = vcmask 1043459
  %v1145 = vsel %vm1144, %v1143, %v1141
  %s1146 = scalar_lea.vmem %s0, 620
  %v1147 = vld [vmem:[%s1146] sm:$0x10]
  %vm1148 = vcmask 1044484
  %v1149 = vsel %vm1148, %v1147, %v1145
  %1150 = vrot.lane.b32.xlu0 %v1149, 80
  %v1151 = vpop.permute.xlu0 %1150
  %vm1152 = vcmask 679552
  %s1153 = scalar_lea.vmem %s1, 16
  %1154 = vst.msk [vmem:[%s1153] sm:$0x1f] %vm1152, %v1151
  %s1155 = scalar_lea.vmem %s0, 69
  %v1156 = vld [vmem:[%s1155] sm:$0x1]
  %s1157 = scalar_lea.vmem %s0, 196
  %v1158 = vld [vmem:[%s1157] sm:$0x2]
  %vm1159 = vcmask 1041409
  %v1160 = vsel %vm1159, %v1158, %v1156
  %s1161 = scalar_lea.vmem %s0, 323
  %v1162 = vld [vmem:[%s1161] sm:$0x4]
  %vm1163 = vcmask 1042434
  %v1164 = vsel %vm1163, %v1162, %v1160
  %s1165 = scalar_lea.vmem %s0, 450
  %v1166 = vld [vmem:[%s1165] sm:$0x8]
  %vm1167 = vcmask 1043459
  %v1168 = vsel %vm1167, %v1166, %v1164
  %s1169 = scalar_lea.vmem %s0, 577
  %v1170 = vld [vmem:[%s1169] sm:$0x10]
  %vm1171 = vcmask 1044484
  %v1172 = vsel %vm1171, %v1170, %v1168
  %1173 = vrot.lane.b32.xlu0 %v1172, 79
  %v1174 = vpop.permute.xlu0 %1173
  %vm1175 = vcmask 671352
  %s1176 = scalar_lea.vmem %s1, 8
  %1177 = vst.msk [vmem:[%s1176] sm:$0x1f] %vm1175, %v1174
  %s1178 = scalar_lea.vmem %s0, 26
  %v1179 = vld [vmem:[%s1178] sm:$0x1]
  %s1180 = scalar_lea.vmem %s0, 153
  %v1181 = vld [vmem:[%s1180] sm:$0x2]
  %vm1182 = vcmask 1041409
  %v1183 = vsel %vm1182, %v1181, %v1179
  %s1184 = scalar_lea.vmem %s0, 280
  %v1185 = vld [vmem:[%s1184] sm:$0x4]
  %vm1186 = vcmask 1042434
  %v1187 = vsel %vm1186, %v1185, %v1183
  %s1188 = scalar_lea.vmem %s0, 407
  %v1189 = vld [vmem:[%s1188] sm:$0x8]
  %vm1190 = vcmask 1043459
  %v1191 = vsel %vm1190, %v1189, %v1187
  %s1192 = scalar_lea.vmem %s0, 534
  %v1193 = vld [vmem:[%s1192] sm:$0x10]
  %vm1194 = vcmask 1044484
  %v1195 = vsel %vm1194, %v1193, %v1191
  %1196 = vrot.lane.b32.xlu0 %v1195, 78
  %v1197 = vpop.permute.xlu0 %1196
  %vm1198 = vcmask 663152
  %1199 = vst.msk [vmem:[%s1] sm:$0x1f] %vm1198, %v1197
  %s1200 = scalar_lea.vmem %s0, 111
  %v1201 = vld [vmem:[%s1200] sm:$0x1]
  %s1202 = scalar_lea.vmem %s0, 238
  %v1203 = vld [vmem:[%s1202] sm:$0x2]
  %vm1204 = vcmask 1041409
  %v1205 = vsel %vm1204, %v1203, %v1201
  %s1206 = scalar_lea.vmem %s0, 365
  %v1207 = vld [vmem:[%s1206] sm:$0x4]
  %vm1208 = vcmask 1042434
  %v1209 = vsel %vm1208, %v1207, %v1205
  %s1210 = scalar_lea.vmem %s0, 492
  %v1211 = vld [vmem:[%s1210] sm:$0x8]
  %vm1212 = vcmask 1043459
  %v1213 = vsel %vm1212, %v1211, %v1209
  %s1214 = scalar_lea.vmem %s0, 619
  %v1215 = vld [vmem:[%s1214] sm:$0x10]
  %vm1216 = vcmask 1044484
  %v1217 = vsel %vm1216, %v1215, %v1213
  %1218 = vrot.lane.b32.xlu0 %v1217, 77
  %v1219 = vpop.permute.xlu0 %1218
  %vm1220 = vcmask 654952
  %s1221 = scalar_lea.vmem %s1, 16
  %1222 = vst.msk [vmem:[%s1221] sm:$0x1f] %vm1220, %v1219
  %s1223 = scalar_lea.vmem %s0, 68
  %v1224 = vld [vmem:[%s1223] sm:$0x1]
  %s1225 = scalar_lea.vmem %s0, 195
  %v1226 = vld [vmem:[%s1225] sm:$0x2]
  %vm1227 = vcmask 1041409
  %v1228 = vsel %vm1227, %v1226, %v1224
  %s1229 = scalar_lea.vmem %s0, 322
  %v1230 = vld [vmem:[%s1229] sm:$0x4]
  %vm1231 = vcmask 1042434
  %v1232 = vsel %vm1231, %v1230, %v1228
  %s1233 = scalar_lea.vmem %s0, 449
  %v1234 = vld [vmem:[%s1233] sm:$0x8]
  %vm1235 = vcmask 1043459
  %v1236 = vsel %vm1235, %v1234, %v1232
  %s1237 = scalar_lea.vmem %s0, 576
  %v1238 = vld [vmem:[%s1237] sm:$0x10]
  %vm1239 = vcmask 1044484
  %v1240 = vsel %vm1239, %v1238, %v1236
  %1241 = vrot.lane.b32.xlu0 %v1240, 76
  %v1242 = vpop.permute.xlu0 %1241
  %vm1243 = vcmask 646752
  %s1244 = scalar_lea.vmem %s1, 8
  %1245 = vst.msk [vmem:[%s1244] sm:$0x1f] %vm1243, %v1242
  %s1246 = scalar_lea.vmem %s0, 25
  %v1247 = vld [vmem:[%s1246] sm:$0x1]
  %s1248 = scalar_lea.vmem %s0, 152
  %v1249 = vld [vmem:[%s1248] sm:$0x2]
  %vm1250 = vcmask 1041409
  %v1251 = vsel %vm1250, %v1249, %v1247
  %s1252 = scalar_lea.vmem %s0, 279
  %v1253 = vld [vmem:[%s1252] sm:$0x4]
  %vm1254 = vcmask 1042434
  %v1255 = vsel %vm1254, %v1253, %v1251
  %s1256 = scalar_lea.vmem %s0, 406
  %v1257 = vld [vmem:[%s1256] sm:$0x8]
  %vm1258 = vcmask 1043459
  %v1259 = vsel %vm1258, %v1257, %v1255
  %s1260 = scalar_lea.vmem %s0, 533
  %v1261 = vld [vmem:[%s1260] sm:$0x10]
  %vm1262 = vcmask 1044484
  %v1263 = vsel %vm1262, %v1261, %v1259
  %1264 = vrot.lane.b32.xlu0 %v1263, 75
  %v1265 = vpop.permute.xlu0 %1264
  %vm1266 = vcmask 638552
  %1267 = vst.msk [vmem:[%s1] sm:$0x1f] %vm1266, %v1265
  %s1268 = scalar_lea.vmem %s0, 110
  %v1269 = vld [vmem:[%s1268] sm:$0x1]
  %s1270 = scalar_lea.vmem %s0, 237
  %v1271 = vld [vmem:[%s1270] sm:$0x2]
  %vm1272 = vcmask 1041409
  %v1273 = vsel %vm1272, %v1271, %v1269
  %s1274 = scalar_lea.vmem %s0, 364
  %v1275 = vld [vmem:[%s1274] sm:$0x4]
  %vm1276 = vcmask 1042434
  %v1277 = vsel %vm1276, %v1275, %v1273
  %s1278 = scalar_lea.vmem %s0, 491
  %v1279 = vld [vmem:[%s1278] sm:$0x8]
  %vm1280 = vcmask 1043459
  %v1281 = vsel %vm1280, %v1279, %v1277
  %s1282 = scalar_lea.vmem %s0, 618
  %v1283 = vld [vmem:[%s1282] sm:$0x10]
  %vm1284 = vcmask 1044484
  %v1285 = vsel %vm1284, %v1283, %v1281
  %1286 = vrot.lane.b32.xlu0 %v1285, 74
  %v1287 = vpop.permute.xlu0 %1286
  %vm1288 = vcmask 630352
  %s1289 = scalar_lea.vmem %s1, 16
  %1290 = vst.msk [vmem:[%s1289] sm:$0x1f] %vm1288, %v1287
  %s1291 = scalar_lea.vmem %s0, 67
  %v1292 = vld [vmem:[%s1291] sm:$0x1]
  %s1293 = scalar_lea.vmem %s0, 194
  %v1294 = vld [vmem:[%s1293] sm:$0x2]
  %vm1295 = vcmask 1041409
  %v1296 = vsel %vm1295, %v1294, %v1292
  %s1297 = scalar_lea.vmem %s0, 321
  %v1298 = vld [vmem:[%s1297] sm:$0x4]
  %vm1299 = vcmask 1042434
  %v1300 = vsel %vm1299, %v1298, %v1296
  %s1301 = scalar_lea.vmem %s0, 448
  %v1302 = vld [vmem:[%s1301] sm:$0x8]
  %vm1303 = vcmask 1043459
  %v1304 = vsel %vm1303, %v1302, %v1300
  %s1305 = scalar_lea.vmem %s0, 575
  %v1306 = vld [vmem:[%s1305] sm:$0x10]
  %vm1307 = vcmask 1044484
  %v1308 = vsel %vm1307, %v1306, %v1304
  %1309 = vrot.lane.b32.xlu0 %v1308, 73
  %v1310 = vpop.permute.xlu0 %1309
  %vm1311 = vcmask 622152
  %s1312 = scalar_lea.vmem %s1, 8
  %1313 = vst.msk [vmem:[%s1312] sm:$0x1f] %vm1311, %v1310
  %s1314 = scalar_lea.vmem %s0, 24
  %v1315 = vld [vmem:[%s1314] sm:$0x1]
  %s1316 = scalar_lea.vmem %s0, 151
  %v1317 = vld [vmem:[%s1316] sm:$0x2]
  %vm1318 = vcmask 1041409
  %v1319 = vsel %vm1318, %v1317, %v1315
  %s1320 = scalar_lea.vmem %s0, 278
  %v1321 = vld [vmem:[%s1320] sm:$0x4]
  %vm1322 = vcmask 1042434
  %v1323 = vsel %vm1322, %v1321, %v1319
  %s1324 = scalar_lea.vmem %s0, 405
  %v1325 = vld [vmem:[%s1324] sm:$0x8]
  %vm1326 = vcmask 1043459
  %v1327 = vsel %vm1326, %v1325, %v1323
  %s1328 = scalar_lea.vmem %s0, 532
  %v1329 = vld [vmem:[%s1328] sm:$0x10]
  %vm1330 = vcmask 1044484
  %v1331 = vsel %vm1330, %v1329, %v1327
  %1332 = vrot.lane.b32.xlu0 %v1331, 72
  %v1333 = vpop.permute.xlu0 %1332
  %vm1334 = vcmask 613952
  %1335 = vst.msk [vmem:[%s1] sm:$0x1f] %vm1334, %v1333
  %s1336 = scalar_lea.vmem %s0, 109
  %v1337 = vld [vmem:[%s1336] sm:$0x1]
  %s1338 = scalar_lea.vmem %s0, 236
  %v1339 = vld [vmem:[%s1338] sm:$0x2]
  %vm1340 = vcmask 1041409
  %v1341 = vsel %vm1340, %v1339, %v1337
  %s1342 = scalar_lea.vmem %s0, 363
  %v1343 = vld [vmem:[%s1342] sm:$0x4]
  %vm1344 = vcmask 1042434
  %v1345 = vsel %vm1344, %v1343, %v1341
  %s1346 = scalar_lea.vmem %s0, 490
  %v1347 = vld [vmem:[%s1346] sm:$0x8]
  %vm1348 = vcmask 1043459
  %v1349 = vsel %vm1348, %v1347, %v1345
  %s1350 = scalar_lea.vmem %s0, 617
  %v1351 = vld [vmem:[%s1350] sm:$0x10]
  %vm1352 = vcmask 1044484
  %v1353 = vsel %vm1352, %v1351, %v1349
  %1354 = vrot.lane.b32.xlu0 %v1353, 71
  %v1355 = vpop.permute.xlu0 %1354
  %vm1356 = vcmask 605752
  %s1357 = scalar_lea.vmem %s1, 16
  %1358 = vst.msk [vmem:[%s1357] sm:$0x1f] %vm1356, %v1355
  %s1359 = scalar_lea.vmem %s0, 66
  %v1360 = vld [vmem:[%s1359] sm:$0x1]
  %s1361 = scalar_lea.vmem %s0, 193
  %v1362 = vld [vmem:[%s1361] sm:$0x2]
  %vm1363 = vcmask 1041409
  %v1364 = vsel %vm1363, %v1362, %v1360
  %s1365 = scalar_lea.vmem %s0, 320
  %v1366 = vld [vmem:[%s1365] sm:$0x4]
  %vm1367 = vcmask 1042434
  %v1368 = vsel %vm1367, %v1366, %v1364
  %s1369 = scalar_lea.vmem %s0, 447
  %v1370 = vld [vmem:[%s1369] sm:$0x8]
  %vm1371 = vcmask 1043459
  %v1372 = vsel %vm1371, %v1370, %v1368
  %s1373 = scalar_lea.vmem %s0, 574
  %v1374 = vld [vmem:[%s1373] sm:$0x10]
  %vm1375 = vcmask 1044484
  %v1376 = vsel %vm1375, %v1374, %v1372
  %1377 = vrot.lane.b32.xlu0 %v1376, 70
  %v1378 = vpop.permute.xlu0 %1377
  %vm1379 = vcmask 597552
  %s1380 = scalar_lea.vmem %s1, 8
  %1381 = vst.msk [vmem:[%s1380] sm:$0x1f] %vm1379, %v1378
  %s1382 = scalar_lea.vmem %s0, 23
  %v1383 = vld [vmem:[%s1382] sm:$0x1]
  %s1384 = scalar_lea.vmem %s0, 150
  %v1385 = vld [vmem:[%s1384] sm:$0x2]
  %vm1386 = vcmask 1041409
  %v1387 = vsel %vm1386, %v1385, %v1383
  %s1388 = scalar_lea.vmem %s0, 277
  %v1389 = vld [vmem:[%s1388] sm:$0x4]
  %vm1390 = vcmask 1042434
  %v1391 = vsel %vm1390, %v1389, %v1387
  %s1392 = scalar_lea.vmem %s0, 404
  %v1393 = vld [vmem:[%s1392] sm:$0x8]
  %vm1394 = vcmask 1043459
  %v1395 = vsel %vm1394, %v1393, %v1391
  %s1396 = scalar_lea.vmem %s0, 531
  %v1397 = vld [vmem:[%s1396] sm:$0x10]
  %vm1398 = vcmask 1044484
  %v1399 = vsel %vm1398, %v1397, %v1395
  %1400 = vrot.lane.b32.xlu0 %v1399, 69
  %v1401 = vpop.permute.xlu0 %1400
  %vm1402 = vcmask 589352
  %1403 = vst.msk [vmem:[%s1] sm:$0x1f] %vm1402, %v1401
  %s1404 = scalar_lea.vmem %s0, 108
  %v1405 = vld [vmem:[%s1404] sm:$0x1]
  %s1406 = scalar_lea.vmem %s0, 235
  %v1407 = vld [vmem:[%s1406] sm:$0x2]
  %vm1408 = vcmask 1041409
  %v1409 = vsel %vm1408, %v1407, %v1405
  %s1410 = scalar_lea.vmem %s0, 362
  %v1411 = vld [vmem:[%s1410] sm:$0x4]
  %vm1412 = vcmask 1042434
  %v1413 = vsel %vm1412, %v1411, %v1409
  %s1414 = scalar_lea.vmem %s0, 489
  %v1415 = vld [vmem:[%s1414] sm:$0x8]
  %vm1416 = vcmask 1043459
  %v1417 = vsel %vm1416, %v1415, %v1413
  %s1418 = scalar_lea.vmem %s0, 616
  %v1419 = vld [vmem:[%s1418] sm:$0x10]
  %vm1420 = vcmask 1044484
  %v1421 = vsel %vm1420, %v1419, %v1417
  %1422 = vrot.lane.b32.xlu0 %v1421, 68
  %v1423 = vpop.permute.xlu0 %1422
  %vm1424 = vcmask 581152
  %s1425 = scalar_lea.vmem %s1, 16
  %1426 = vst.msk [vmem:[%s1425] sm:$0x1f] %vm1424, %v1423
  %s1427 = scalar_lea.vmem %s0, 65
  %v1428 = vld [vmem:[%s1427] sm:$0x1]
  %s1429 = scalar_lea.vmem %s0, 192
  %v1430 = vld [vmem:[%s1429] sm:$0x2]
  %vm1431 = vcmask 1041409
  %v1432 = vsel %vm1431, %v1430, %v1428
  %s1433 = scalar_lea.vmem %s0, 319
  %v1434 = vld [vmem:[%s1433] sm:$0x4]
  %vm1435 = vcmask 1042434
  %v1436 = vsel %vm1435, %v1434, %v1432
  %s1437 = scalar_lea.vmem %s0, 446
  %v1438 = vld [vmem:[%s1437] sm:$0x8]
  %vm1439 = vcmask 1043459
  %v1440 = vsel %vm1439, %v1438, %v1436
  %s1441 = scalar_lea.vmem %s0, 573
  %v1442 = vld [vmem:[%s1441] sm:$0x10]
  %vm1443 = vcmask 1044484
  %v1444 = vsel %vm1443, %v1442, %v1440
  %1445 = vrot.lane.b32.xlu0 %v1444, 67
  %v1446 = vpop.permute.xlu0 %1445
  %vm1447 = vcmask 572952
  %s1448 = scalar_lea.vmem %s1, 8
  %1449 = vst.msk [vmem:[%s1448] sm:$0x1f] %vm1447, %v1446
  %s1450 = scalar_lea.vmem %s0, 22
  %v1451 = vld [vmem:[%s1450] sm:$0x1]
  %s1452 = scalar_lea.vmem %s0, 149
  %v1453 = vld [vmem:[%s1452] sm:$0x2]
  %vm1454 = vcmask 1041409
  %v1455 = vsel %vm1454, %v1453, %v1451
  %s1456 = scalar_lea.vmem %s0, 276
  %v1457 = vld [vmem:[%s1456] sm:$0x4]
  %vm1458 = vcmask 1042434
  %v1459 = vsel %vm1458, %v1457, %v1455
  %s1460 = scalar_lea.vmem %s0, 403
  %v1461 = vld [vmem:[%s1460] sm:$0x8]
  %vm1462 = vcmask 1043459
  %v1463 = vsel %vm1462, %v1461, %v1459
  %s1464 = scalar_lea.vmem %s0, 530
  %v1465 = vld [vmem:[%s1464] sm:$0x10]
  %vm1466 = vcmask 1044484
  %v1467 = vsel %vm1466, %v1465, %v1463
  %1468 = vrot.lane.b32.xlu0 %v1467, 66
  %v1469 = vpop.permute.xlu0 %1468
  %vm1470 = vcmask 564752
  %1471 = vst.msk [vmem:[%s1] sm:$0x1f] %vm1470, %v1469
  %s1472 = scalar_lea.vmem %s0, 107
  %v1473 = vld [vmem:[%s1472] sm:$0x1]
  %s1474 = scalar_lea.vmem %s0, 234
  %v1475 = vld [vmem:[%s1474] sm:$0x2]
  %vm1476 = vcmask 1041409
  %v1477 = vsel %vm1476, %v1475, %v1473
  %s1478 = scalar_lea.vmem %s0, 361
  %v1479 = vld [vmem:[%s1478] sm:$0x4]
  %vm1480 = vcmask 1042434
  %v1481 = vsel %vm1480, %v1479, %v1477
  %s1482 = scalar_lea.vmem %s0, 488
  %v1483 = vld [vmem:[%s1482] sm:$0x8]
  %vm1484 = vcmask 1043459
  %v1485 = vsel %vm1484, %v1483, %v1481
  %s1486 = scalar_lea.vmem %s0, 615
  %v1487 = vld [vmem:[%s1486] sm:$0x10]
  %vm1488 = vcmask 1044484
  %v1489 = vsel %vm1488, %v1487, %v1485
  %1490 = vrot.lane.b32.xlu0 %v1489, 65
  %v1491 = vpop.permute.xlu0 %1490
  %vm1492 = vcmask 556552
  %s1493 = scalar_lea.vmem %s1, 16
  %1494 = vst.msk [vmem:[%s1493] sm:$0x1f] %vm1492, %v1491
  %s1495 = scalar_lea.vmem %s0, 64
  %v1496 = vld [vmem:[%s1495] sm:$0x1]
  %s1497 = scalar_lea.vmem %s0, 191
  %v1498 = vld [vmem:[%s1497] sm:$0x2]
  %vm1499 = vcmask 1041409
  %v1500 = vsel %vm1499, %v1498, %v1496
  %s1501 = scalar_lea.vmem %s0, 318
  %v1502 = vld [vmem:[%s1501] sm:$0x4]
  %vm1503 = vcmask 1042434
  %v1504 = vsel %vm1503, %v1502, %v1500
  %s1505 = scalar_lea.vmem %s0, 445
  %v1506 = vld [vmem:[%s1505] sm:$0x8]
  %vm1507 = vcmask 1043459
  %v1508 = vsel %vm1507, %v1506, %v1504
  %s1509 = scalar_lea.vmem %s0, 572
  %v1510 = vld [vmem:[%s1509] sm:$0x10]
  %vm1511 = vcmask 1044484
  %v1512 = vsel %vm1511, %v1510, %v1508
  %1513 = vrot.lane.b32.xlu0 %v1512, 64
  %v1514 = vpop.permute.xlu0 %1513
  %vm1515 = vcmask 548352
  %s1516 = scalar_lea.vmem %s1, 8
  %1517 = vst.msk [vmem:[%s1516] sm:$0x1f] %vm1515, %v1514
  %s1518 = scalar_lea.vmem %s0, 21
  %v1519 = vld [vmem:[%s1518] sm:$0x1]
  %s1520 = scalar_lea.vmem %s0, 148
  %v1521 = vld [vmem:[%s1520] sm:$0x2]
  %vm1522 = vcmask 1041409
  %v1523 = vsel %vm1522, %v1521, %v1519
  %s1524 = scalar_lea.vmem %s0, 275
  %v1525 = vld [vmem:[%s1524] sm:$0x4]
  %vm1526 = vcmask 1042434
  %v1527 = vsel %vm1526, %v1525, %v1523
  %s1528 = scalar_lea.vmem %s0, 402
  %v1529 = vld [vmem:[%s1528] sm:$0x8]
  %vm1530 = vcmask 1043459
  %v1531 = vsel %vm1530, %v1529, %v1527
  %s1532 = scalar_lea.vmem %s0, 529
  %v1533 = vld [vmem:[%s1532] sm:$0x10]
  %vm1534 = vcmask 1044484
  %v1535 = vsel %vm1534, %v1533, %v1531
  %1536 = vrot.lane.b32.xlu0 %v1535, 63
  %v1537 = vpop.permute.xlu0 %1536
  %vm1538 = vcmask 540152
  %1539 = vst.msk [vmem:[%s1] sm:$0x1f] %vm1538, %v1537
  %s1540 = scalar_lea.vmem %s0, 106
  %v1541 = vld [vmem:[%s1540] sm:$0x1]
  %s1542 = scalar_lea.vmem %s0, 233
  %v1543 = vld [vmem:[%s1542] sm:$0x2]
  %vm1544 = vcmask 1041409
  %v1545 = vsel %vm1544, %v1543, %v1541
  %s1546 = scalar_lea.vmem %s0, 360
  %v1547 = vld [vmem:[%s1546] sm:$0x4]
  %vm1548 = vcmask 1042434
  %v1549 = vsel %vm1548, %v1547, %v1545
  %s1550 = scalar_lea.vmem %s0, 487
  %v1551 = vld [vmem:[%s1550] sm:$0x8]
  %vm1552 = vcmask 1043459
  %v1553 = vsel %vm1552, %v1551, %v1549
  %s1554 = scalar_lea.vmem %s0, 614
  %v1555 = vld [vmem:[%s1554] sm:$0x10]
  %vm1556 = vcmask 1044484
  %v1557 = vsel %vm1556, %v1555, %v1553
  %1558 = vrot.lane.b32.xlu0 %v1557, 62
  %v1559 = vpop.permute.xlu0 %1558
  %vm1560 = vcmask 531952
  %s1561 = scalar_lea.vmem %s1, 16
  %1562 = vst.msk [vmem:[%s1561] sm:$0x1f] %vm1560, %v1559
  %s1563 = scalar_lea.vmem %s0, 63
  %v1564 = vld [vmem:[%s1563] sm:$0x1]
  %s1565 = scalar_lea.vmem %s0, 190
  %v1566 = vld [vmem:[%s1565] sm:$0x2]
  %vm1567 = vcmask 1041409
  %v1568 = vsel %vm1567, %v1566, %v1564
  %s1569 = scalar_lea.vmem %s0, 317
  %v1570 = vld [vmem:[%s1569] sm:$0x4]
  %vm1571 = vcmask 1042434
  %v1572 = vsel %vm1571, %v1570, %v1568
  %s1573 = scalar_lea.vmem %s0, 444
  %v1574 = vld [vmem:[%s1573] sm:$0x8]
  %vm1575 = vcmask 1043459
  %v1576 = vsel %vm1575, %v1574, %v1572
  %s1577 = scalar_lea.vmem %s0, 571
  %v1578 = vld [vmem:[%s1577] sm:$0x10]
  %vm1579 = vcmask 1044484
  %v1580 = vsel %vm1579, %v1578, %v1576
  %1581 = vrot.lane.b32.xlu0 %v1580, 61
  %v1582 = vpop.permute.xlu0 %1581
  %vm1583 = vcmask 523752
  %s1584 = scalar_lea.vmem %s1, 8
  %1585 = vst.msk [vmem:[%s1584] sm:$0x1f] %vm1583, %v1582
  %s1586 = scalar_lea.vmem %s0, 20
  %v1587 = vld [vmem:[%s1586] sm:$0x1]
  %s1588 = scalar_lea.vmem %s0, 147
  %v1589 = vld [vmem:[%s1588] sm:$0x2]
  %vm1590 = vcmask 1041409
  %v1591 = vsel %vm1590, %v1589, %v1587
  %s1592 = scalar_lea.vmem %s0, 274
  %v1593 = vld [vmem:[%s1592] sm:$0x4]
  %vm1594 = vcmask 1042434
  %v1595 = vsel %vm1594, %v1593, %v1591
  %s1596 = scalar_lea.vmem %s0, 401
  %v1597 = vld [vmem:[%s1596] sm:$0x8]
  %vm1598 = vcmask 1043459
  %v1599 = vsel %vm1598, %v1597, %v1595
  %s1600 = scalar_lea.vmem %s0, 528
  %v1601 = vld [vmem:[%s1600] sm:$0x10]
  %vm1602 = vcmask 1044484
  %v1603 = vsel %vm1602, %v1601, %v1599
  %1604 = vrot.lane.b32.xlu0 %v1603, 60
  %v1605 = vpop.permute.xlu0 %1604
  %vm1606 = vcmask 515552
  %1607 = vst.msk [vmem:[%s1] sm:$0x1f] %vm1606, %v1605
  %s1608 = scalar_lea.vmem %s0, 105
  %v1609 = vld [vmem:[%s1608] sm:$0x1]
  %s1610 = scalar_lea.vmem %s0, 232
  %v1611 = vld [vmem:[%s1610] sm:$0x2]
  %vm1612 = vcmask 1041409
  %v1613 = vsel %vm1612, %v1611, %v1609
  %s1614 = scalar_lea.vmem %s0, 359
  %v1615 = vld [vmem:[%s1614] sm:$0x4]
  %vm1616 = vcmask 1042434
  %v1617 = vsel %vm1616, %v1615, %v1613
  %s1618 = scalar_lea.vmem %s0, 486
  %v1619 = vld [vmem:[%s1618] sm:$0x8]
  %vm1620 = vcmask 1043459
  %v1621 = vsel %vm1620, %v1619, %v1617
  %s1622 = scalar_lea.vmem %s0, 613
  %v1623 = vld [vmem:[%s1622] sm:$0x10]
  %vm1624 = vcmask 1044484
  %v1625 = vsel %vm1624, %v1623, %v1621
  %1626 = vrot.lane.b32.xlu0 %v1625, 59
  %v1627 = vpop.permute.xlu0 %1626
  %vm1628 = vcmask 507352
  %s1629 = scalar_lea.vmem %s1, 16
  %1630 = vst.msk [vmem:[%s1629] sm:$0x1f] %vm1628, %v1627
  %s1631 = scalar_lea.vmem %s0, 62
  %v1632 = vld [vmem:[%s1631] sm:$0x1]
  %s1633 = scalar_lea.vmem %s0, 189
  %v1634 = vld [vmem:[%s1633] sm:$0x2]
  %vm1635 = vcmask 1041409
  %v1636 = vsel %vm1635, %v1634, %v1632
  %s1637 = scalar_lea.vmem %s0, 316
  %v1638 = vld [vmem:[%s1637] sm:$0x4]
  %vm1639 = vcmask 1042434
  %v1640 = vsel %vm1639, %v1638, %v1636
  %s1641 = scalar_lea.vmem %s0, 443
  %v1642 = vld [vmem:[%s1641] sm:$0x8]
  %vm1643 = vcmask 1043459
  %v1644 = vsel %vm1643, %v1642, %v1640
  %s1645 = scalar_lea.vmem %s0, 570
  %v1646 = vld [vmem:[%s1645] sm:$0x10]
  %vm1647 = vcmask 1044484
  %v1648 = vsel %vm1647, %v1646, %v1644
  %1649 = vrot.lane.b32.xlu0 %v1648, 58
  %v1650 = vpop.permute.xlu0 %1649
  %vm1651 = vcmask 499152
  %s1652 = scalar_lea.vmem %s1, 8
  %1653 = vst.msk [vmem:[%s1652] sm:$0x1f] %vm1651, %v1650
  %s1654 = scalar_lea.vmem %s0, 19
  %v1655 = vld [vmem:[%s1654] sm:$0x1]
  %s1656 = scalar_lea.vmem %s0, 146
  %v1657 = vld [vmem:[%s1656] sm:$0x2]
  %vm1658 = vcmask 1041409
  %v1659 = vsel %vm1658, %v1657, %v1655
  %s1660 = scalar_lea.vmem %s0, 273
  %v1661 = vld [vmem:[%s1660] sm:$0x4]
  %vm1662 = vcmask 1042434
  %v1663 = vsel %vm1662, %v1661, %v1659
  %s1664 = scalar_lea.vmem %s0, 400
  %v1665 = vld [vmem:[%s1664] sm:$0x8]
  %vm1666 = vcmask 1043459
  %v1667 = vsel %vm1666, %v1665, %v1663
  %s1668 = scalar_lea.vmem %s0, 527
  %v1669 = vld [vmem:[%s1668] sm:$0x10]
  %vm1670 = vcmask 1044484
  %v1671 = vsel %vm1670, %v1669, %v1667
  %1672 = vrot.lane.b32.xlu0 %v1671, 57
  %v1673 = vpop.permute.xlu0 %1672
  %vm1674 = vcmask 490952
  %1675 = vst.msk [vmem:[%s1] sm:$0x1f] %vm1674, %v1673
  %s1676 = scalar_lea.vmem %s0, 104
  %v1677 = vld [vmem:[%s1676] sm:$0x1]
  %s1678 = scalar_lea.vmem %s0, 231
  %v1679 = vld [vmem:[%s1678] sm:$0x2]
  %vm1680 = vcmask 1041409
  %v1681 = vsel %vm1680, %v1679, %v1677
  %s1682 = scalar_lea.vmem %s0, 358
  %v1683 = vld [vmem:[%s1682] sm:$0x4]
  %vm1684 = vcmask 1042434
  %v1685 = vsel %vm1684, %v1683, %v1681
  %s1686 = scalar_lea.vmem %s0, 485
  %v1687 = vld [vmem:[%s1686] sm:$0x8]
  %vm1688 = vcmask 1043459
  %v1689 = vsel %vm1688, %v1687, %v1685
  %s1690 = scalar_lea.vmem %s0, 612
  %v1691 = vld [vmem:[%s1690] sm:$0x10]
  %vm1692 = vcmask 1044484
  %v1693 = vsel %vm1692, %v1691, %v1689
  %1694 = vrot.lane.b32.xlu0 %v1693, 56
  %v1695 = vpop.permute.xlu0 %1694
  %vm1696 = vcmask 482752
  %s1697 = scalar_lea.vmem %s1, 16
  %1698 = vst.msk [vmem:[%s1697] sm:$0x1f] %vm1696, %v1695
  %s1699 = scalar_lea.vmem %s0, 61
  %v1700 = vld [vmem:[%s1699] sm:$0x1]
  %s1701 = scalar_lea.vmem %s0, 188
  %v1702 = vld [vmem:[%s1701] sm:$0x2]
  %vm1703 = vcmask 1041409
  %v1704 = vsel %vm1703, %v1702, %v1700
  %s1705 = scalar_lea.vmem %s0, 315
  %v1706 = vld [vmem:[%s1705] sm:$0x4]
  %vm1707 = vcmask 1042434
  %v1708 = vsel %vm1707, %v1706, %v1704
  %s1709 = scalar_lea.vmem %s0, 442
  %v1710 = vld [vmem:[%s1709] sm:$0x8]
  %vm1711 = vcmask 1043459
  %v1712 = vsel %vm1711, %v1710, %v1708
  %s1713 = scalar_lea.vmem %s0, 569
  %v1714 = vld [vmem:[%s1713] sm:$0x10]
  %vm1715 = vcmask 1044484
  %v1716 = vsel %vm1715, %v1714, %v1712
  %1717 = vrot.lane.b32.xlu0 %v1716, 55
  %v1718 = vpop.permute.xlu0 %1717
  %vm1719 = vcmask 474552
  %s1720 = scalar_lea.vmem %s1, 8
  %1721 = vst.msk [vmem:[%s1720] sm:$0x1f] %vm1719, %v1718
  %s1722 = scalar_lea.vmem %s0, 18
  %v1723 = vld [vmem:[%s1722] sm:$0x1]
  %s1724 = scalar_lea.vmem %s0, 145
  %v1725 = vld [vmem:[%s1724] sm:$0x2]
  %vm1726 = vcmask 1041409
  %v1727 = vsel %vm1726, %v1725, %v1723
  %s1728 = scalar_lea.vmem %s0, 272
  %v1729 = vld [vmem:[%s1728] sm:$0x4]
  %vm1730 = vcmask 1042434
  %v1731 = vsel %vm1730, %v1729, %v1727
  %s1732 = scalar_lea.vmem %s0, 399
  %v1733 = vld [vmem:[%s1732] sm:$0x8]
  %vm1734 = vcmask 1043459
  %v1735 = vsel %vm1734, %v1733, %v1731
  %s1736 = scalar_lea.vmem %s0, 526
  %v1737 = vld [vmem:[%s1736] sm:$0x10]
  %vm1738 = vcmask 1044484
  %v1739 = vsel %vm1738, %v1737, %v1735
  %1740 = vrot.lane.b32.xlu0 %v1739, 54
  %v1741 = vpop.permute.xlu0 %1740
  %vm1742 = vcmask 466352
  %1743 = vst.msk [vmem:[%s1] sm:$0x1f] %vm1742, %v1741
  %s1744 = scalar_lea.vmem %s0, 103
  %v1745 = vld [vmem:[%s1744] sm:$0x1]
  %s1746 = scalar_lea.vmem %s0, 230
  %v1747 = vld [vmem:[%s1746] sm:$0x2]
  %vm1748 = vcmask 1041409
  %v1749 = vsel %vm1748, %v1747, %v1745
  %s1750 = scalar_lea.vmem %s0, 357
  %v1751 = vld [vmem:[%s1750] sm:$0x4]
  %vm1752 = vcmask 1042434
  %v1753 = vsel %vm1752, %v1751, %v1749
  %s1754 = scalar_lea.vmem %s0, 484
  %v1755 = vld [vmem:[%s1754] sm:$0x8]
  %vm1756 = vcmask 1043459
  %v1757 = vsel %vm1756, %v1755, %v1753
  %s1758 = scalar_lea.vmem %s0, 611
  %v1759 = vld [vmem:[%s1758] sm:$0x10]
  %vm1760 = vcmask 1044484
  %v1761 = vsel %vm1760, %v1759, %v1757
  %1762 = vrot.lane.b32.xlu0 %v1761, 53
  %v1763 = vpop.permute.xlu0 %1762
  %vm1764 = vcmask 458152
  %s1765 = scalar_lea.vmem %s1, 16
  %1766 = vst.msk [vmem:[%s1765] sm:$0x1f] %vm1764, %v1763
  %s1767 = scalar_lea.vmem %s0, 60
  %v1768 = vld [vmem:[%s1767] sm:$0x1]
  %s1769 = scalar_lea.vmem %s0, 187
  %v1770 = vld [vmem:[%s1769] sm:$0x2]
  %vm1771 = vcmask 1041409
  %v1772 = vsel %vm1771, %v1770, %v1768
  %s1773 = scalar_lea.vmem %s0, 314
  %v1774 = vld [vmem:[%s1773] sm:$0x4]
  %vm1775 = vcmask 1042434
  %v1776 = vsel %vm1775, %v1774, %v1772
  %s1777 = scalar_lea.vmem %s0, 441
  %v1778 = vld [vmem:[%s1777] sm:$0x8]
  %vm1779 = vcmask 1043459
  %v1780 = vsel %vm1779, %v1778, %v1776
  %s1781 = scalar_lea.vmem %s0, 568
  %v1782 = vld [vmem:[%s1781] sm:$0x10]
  %vm1783 = vcmask 1044484
  %v1784 = vsel %vm1783, %v1782, %v1780
  %1785 = vrot.lane.b32.xlu0 %v1784, 52
  %v1786 = vpop.permute.xlu0 %1785
  %vm1787 = vcmask 449952
  %s1788 = scalar_lea.vmem %s1, 8
  %1789 = vst.msk [vmem:[%s1788] sm:$0x1f] %vm1787, %v1786
  %s1790 = scalar_lea.vmem %s0, 17
  %v1791 = vld [vmem:[%s1790] sm:$0x1]
  %s1792 = scalar_lea.vmem %s0, 144
  %v1793 = vld [vmem:[%s1792] sm:$0x2]
  %vm1794 = vcmask 1041409
  %v1795 = vsel %vm1794, %v1793, %v1791
  %s1796 = scalar_lea.vmem %s0, 271
  %v1797 = vld [vmem:[%s1796] sm:$0x4]
  %vm1798 = vcmask 1042434
  %v1799 = vsel %vm1798, %v1797, %v1795
  %s1800 = scalar_lea.vmem %s0, 398
  %v1801 = vld [vmem:[%s1800] sm:$0x8]
  %vm1802 = vcmask 1043459
  %v1803 = vsel %vm1802, %v1801, %v1799
  %s1804 = scalar_lea.vmem %s0, 525
  %v1805 = vld [vmem:[%s1804] sm:$0x10]
  %vm1806 = vcmask 1044484
  %v1807 = vsel %vm1806, %v1805, %v1803
  %1808 = vrot.lane.b32.xlu0 %v1807, 51
  %v1809 = vpop.permute.xlu0 %1808
  %vm1810 = vcmask 441752
  %1811 = vst.msk [vmem:[%s1] sm:$0x1f] %vm1810, %v1809
  %s1812 = scalar_lea.vmem %s0, 102
  %v1813 = vld [vmem:[%s1812] sm:$0x1]
  %s1814 = scalar_lea.vmem %s0, 229
  %v1815 = vld [vmem:[%s1814] sm:$0x2]
  %vm1816 = vcmask 1041409
  %v1817 = vsel %vm1816, %v1815, %v1813
  %s1818 = scalar_lea.vmem %s0, 356
  %v1819 = vld [vmem:[%s1818] sm:$0x4]
  %vm1820 = vcmask 1042434
  %v1821 = vsel %vm1820, %v1819, %v1817
  %s1822 = scalar_lea.vmem %s0, 483
  %v1823 = vld [vmem:[%s1822] sm:$0x8]
  %vm1824 = vcmask 1043459
  %v1825 = vsel %vm1824, %v1823, %v1821
  %s1826 = scalar_lea.vmem %s0, 610
  %v1827 = vld [vmem:[%s1826] sm:$0x10]
  %vm1828 = vcmask 1044484
  %v1829 = vsel %vm1828, %v1827, %v1825
  %1830 = vrot.lane.b32.xlu0 %v1829, 50
  %v1831 = vpop.permute.xlu0 %1830
  %vm1832 = vcmask 433552
  %s1833 = scalar_lea.vmem %s1, 16
  %1834 = vst.msk [vmem:[%s1833] sm:$0x1f] %vm1832, %v1831
  %s1835 = scalar_lea.vmem %s0, 59
  %v1836 = vld [vmem:[%s1835] sm:$0x1]
  %s1837 = scalar_lea.vmem %s0, 186
  %v1838 = vld [vmem:[%s1837] sm:$0x2]
  %vm1839 = vcmask 1041409
  %v1840 = vsel %vm1839, %v1838, %v1836
  %s1841 = scalar_lea.vmem %s0, 313
  %v1842 = vld [vmem:[%s1841] sm:$0x4]
  %vm1843 = vcmask 1042434
  %v1844 = vsel %vm1843, %v1842, %v1840
  %s1845 = scalar_lea.vmem %s0, 440
  %v1846 = vld [vmem:[%s1845] sm:$0x8]
  %vm1847 = vcmask 1043459
  %v1848 = vsel %vm1847, %v1846, %v1844
  %s1849 = scalar_lea.vmem %s0, 567
  %v1850 = vld [vmem:[%s1849] sm:$0x10]
  %vm1851 = vcmask 1044484
  %v1852 = vsel %vm1851, %v1850, %v1848
  %1853 = vrot.lane.b32.xlu0 %v1852, 49
  %v1854 = vpop.permute.xlu0 %1853
  %vm1855 = vcmask 425352
  %s1856 = scalar_lea.vmem %s1, 8
  %1857 = vst.msk [vmem:[%s1856] sm:$0x1f] %vm1855, %v1854
  %s1858 = scalar_lea.vmem %s0, 16
  %v1859 = vld [vmem:[%s1858] sm:$0x1]
  %s1860 = scalar_lea.vmem %s0, 143
  %v1861 = vld [vmem:[%s1860] sm:$0x2]
  %vm1862 = vcmask 1041409
  %v1863 = vsel %vm1862, %v1861, %v1859
  %s1864 = scalar_lea.vmem %s0, 270
  %v1865 = vld [vmem:[%s1864] sm:$0x4]
  %vm1866 = vcmask 1042434
  %v1867 = vsel %vm1866, %v1865, %v1863
  %s1868 = scalar_lea.vmem %s0, 397
  %v1869 = vld [vmem:[%s1868] sm:$0x8]
  %vm1870 = vcmask 1043459
  %v1871 = vsel %vm1870, %v1869, %v1867
  %s1872 = scalar_lea.vmem %s0, 524
  %v1873 = vld [vmem:[%s1872] sm:$0x10]
  %vm1874 = vcmask 1044484
  %v1875 = vsel %vm1874, %v1873, %v1871
  %1876 = vrot.lane.b32.xlu0 %v1875, 48
  %v1877 = vpop.permute.xlu0 %1876
  %vm1878 = vcmask 417152
  %1879 = vst.msk [vmem:[%s1] sm:$0x1f] %vm1878, %v1877
  %s1880 = scalar_lea.vmem %s0, 101
  %v1881 = vld [vmem:[%s1880] sm:$0x1]
  %s1882 = scalar_lea.vmem %s0, 228
  %v1883 = vld [vmem:[%s1882] sm:$0x2]
  %vm1884 = vcmask 1041409
  %v1885 = vsel %vm1884, %v1883, %v1881
  %s1886 = scalar_lea.vmem %s0, 355
  %v1887 = vld [vmem:[%s1886] sm:$0x4]
  %vm1888 = vcmask 1042434
  %v1889 = vsel %vm1888, %v1887, %v1885
  %s1890 = scalar_lea.vmem %s0, 482
  %v1891 = vld [vmem:[%s1890] sm:$0x8]
  %vm1892 = vcmask 1043459
  %v1893 = vsel %vm1892, %v1891, %v1889
  %s1894 = scalar_lea.vmem %s0, 609
  %v1895 = vld [vmem:[%s1894] sm:$0x10]
  %vm1896 = vcmask 1044484
  %v1897 = vsel %vm1896, %v1895, %v1893
  %1898 = vrot.lane.b32.xlu0 %v1897, 47
  %v1899 = vpop.permute.xlu0 %1898
  %vm1900 = vcmask 408952
  %s1901 = scalar_lea.vmem %s1, 16
  %1902 = vst.msk [vmem:[%s1901] sm:$0x1f] %vm1900, %v1899
  %s1903 = scalar_lea.vmem %s0, 58
  %v1904 = vld [vmem:[%s1903] sm:$0x1]
  %s1905 = scalar_lea.vmem %s0, 185
  %v1906 = vld [vmem:[%s1905] sm:$0x2]
  %vm1907 = vcmask 1041409
  %v1908 = vsel %vm1907, %v1906, %v1904
  %s1909 = scalar_lea.vmem %s0, 312
  %v1910 = vld [vmem:[%s1909] sm:$0x4]
  %vm1911 = vcmask 1042434
  %v1912 = vsel %vm1911, %v1910, %v1908
  %s1913 = scalar_lea.vmem %s0, 439
  %v1914 = vld [vmem:[%s1913] sm:$0x8]
  %vm1915 = vcmask 1043459
  %v1916 = vsel %vm1915, %v1914, %v1912
  %s1917 = scalar_lea.vmem %s0, 566
  %v1918 = vld [vmem:[%s1917] sm:$0x10]
  %vm1919 = vcmask 1044484
  %v1920 = vsel %vm1919, %v1918, %v1916
  %1921 = vrot.lane.b32.xlu0 %v1920, 46
  %v1922 = vpop.permute.xlu0 %1921
  %vm1923 = vcmask 400752
  %s1924 = scalar_lea.vmem %s1, 8
  %1925 = vst.msk [vmem:[%s1924] sm:$0x1f] %vm1923, %v1922
  %s1926 = scalar_lea.vmem %s0, 15
  %v1927 = vld [vmem:[%s1926] sm:$0x1]
  %s1928 = scalar_lea.vmem %s0, 142
  %v1929 = vld [vmem:[%s1928] sm:$0x2]
  %vm1930 = vcmask 1041409
  %v1931 = vsel %vm1930, %v1929, %v1927
  %s1932 = scalar_lea.vmem %s0, 269
  %v1933 = vld [vmem:[%s1932] sm:$0x4]
  %vm1934 = vcmask 1042434
  %v1935 = vsel %vm1934, %v1933, %v1931
  %s1936 = scalar_lea.vmem %s0, 396
  %v1937 = vld [vmem:[%s1936] sm:$0x8]
  %vm1938 = vcmask 1043459
  %v1939 = vsel %vm1938, %v1937, %v1935
  %s1940 = scalar_lea.vmem %s0, 523
  %v1941 = vld [vmem:[%s1940] sm:$0x10]
  %vm1942 = vcmask 1044484
  %v1943 = vsel %vm1942, %v1941, %v1939
  %1944 = vrot.lane.b32.xlu0 %v1943, 45
  %v1945 = vpop.permute.xlu0 %1944
  %vm1946 = vcmask 392552
  %1947 = vst.msk [vmem:[%s1] sm:$0x1f] %vm1946, %v1945
  %s1948 = scalar_lea.vmem %s0, 100
  %v1949 = vld [vmem:[%s1948] sm:$0x1]
  %s1950 = scalar_lea.vmem %s0, 227
  %v1951 = vld [vmem:[%s1950] sm:$0x2]
  %vm1952 = vcmask 1041409
  %v1953 = vsel %vm1952, %v1951, %v1949
  %s1954 = scalar_lea.vmem %s0, 354
  %v1955 = vld [vmem:[%s1954] sm:$0x4]
  %vm1956 = vcmask 1042434
  %v1957 = vsel %vm1956, %v1955, %v1953
  %s1958 = scalar_lea.vmem %s0, 481
  %v1959 = vld [vmem:[%s1958] sm:$0x8]
  %vm1960 = vcmask 1043459
  %v1961 = vsel %vm1960, %v1959, %v1957
  %s1962 = scalar_lea.vmem %s0, 608
  %v1963 = vld [vmem:[%s1962] sm:$0x10]
  %vm1964 = vcmask 1044484
  %v1965 = vsel %vm1964, %v1963, %v1961
  %1966 = vrot.lane.b32.xlu0 %v1965, 44
  %v1967 = vpop.permute.xlu0 %1966
  %vm1968 = vcmask 384352
  %s1969 = scalar_lea.vmem %s1, 16
  %1970 = vst.msk [vmem:[%s1969] sm:$0x1f] %vm1968, %v1967
  %s1971 = scalar_lea.vmem %s0, 57
  %v1972 = vld [vmem:[%s1971] sm:$0x1]
  %s1973 = scalar_lea.vmem %s0, 184
  %v1974 = vld [vmem:[%s1973] sm:$0x2]
  %vm1975 = vcmask 1041409
  %v1976 = vsel %vm1975, %v1974, %v1972
  %s1977 = scalar_lea.vmem %s0, 311
  %v1978 = vld [vmem:[%s1977] sm:$0x4]
  %vm1979 = vcmask 1042434
  %v1980 = vsel %vm1979, %v1978, %v1976
  %s1981 = scalar_lea.vmem %s0, 438
  %v1982 = vld [vmem:[%s1981] sm:$0x8]
  %vm1983 = vcmask 1043459
  %v1984 = vsel %vm1983, %v1982, %v1980
  %s1985 = scalar_lea.vmem %s0, 565
  %v1986 = vld [vmem:[%s1985] sm:$0x10]
  %vm1987 = vcmask 1044484
  %v1988 = vsel %vm1987, %v1986, %v1984
  %1989 = vrot.lane.b32.xlu0 %v1988, 43
  %v1990 = vpop.permute.xlu0 %1989
  %vm1991 = vcmask 376152
  %s1992 = scalar_lea.vmem %s1, 8
  %1993 = vst.msk [vmem:[%s1992] sm:$0x1f] %vm1991, %v1990
  %s1994 = scalar_lea.vmem %s0, 14
  %v1995 = vld [vmem:[%s1994] sm:$0x1]
  %s1996 = scalar_lea.vmem %s0, 141
  %v1997 = vld [vmem:[%s1996] sm:$0x2]
  %vm1998 = vcmask 1041409
  %v1999 = vsel %vm1998, %v1997, %v1995
  %s2000 = scalar_lea.vmem %s0, 268
  %v2001 = vld [vmem:[%s2000] sm:$0x4]
  %vm2002 = vcmask 1042434
  %v2003 = vsel %vm2002, %v2001, %v1999
  %s2004 = scalar_lea.vmem %s0, 395
  %v2005 = vld [vmem:[%s2004] sm:$0x8]
  %vm2006 = vcmask 1043459
  %v2007 = vsel %vm2006, %v2005, %v2003
  %s2008 = scalar_lea.vmem %s0, 522
  %v2009 = vld [vmem:[%s2008] sm:$0x10]
  %vm2010 = vcmask 1044484
  %v2011 = vsel %vm2010, %v2009, %v2007
  %2012 = vrot.lane.b32.xlu0 %v2011, 42
  %v2013 = vpop.permute.xlu0 %2012
  %vm2014 = vcmask 367952
  %2015 = vst.msk [vmem:[%s1] sm:$0x1f] %vm2014, %v2013
  %s2016 = scalar_lea.vmem %s0, 99
  %v2017 = vld [vmem:[%s2016] sm:$0x1]
  %s2018 = scalar_lea.vmem %s0, 226
  %v2019 = vld [vmem:[%s2018] sm:$0x2]
  %vm2020 = vcmask 1041409
  %v2021 = vsel %vm2020, %v2019, %v2017
  %s2022 = scalar_lea.vmem %s0, 353
  %v2023 = vld [vmem:[%s2022] sm:$0x4]
  %vm2024 = vcmask 1042434
  %v2025 = vsel %vm2024, %v2023, %v2021
  %s2026 = scalar_lea.vmem %s0, 480
  %v2027 = vld [vmem:[%s2026] sm:$0x8]
  %vm2028 = vcmask 1043459
  %v2029 = vsel %vm2028, %v2027, %v2025
  %s2030 = scalar_lea.vmem %s0, 607
  %v2031 = vld [vmem:[%s2030] sm:$0x10]
  %vm2032 = vcmask 1044484
  %v2033 = vsel %vm2032, %v2031, %v2029
  %2034 = vrot.lane.b32.xlu0 %v2033, 41
  %v2035 = vpop.permute.xlu0 %2034
  %vm2036 = vcmask 359752
  %s2037 = scalar_lea.vmem %s1, 16
  %2038 = vst.msk [vmem:[%s2037] sm:$0x1f] %vm2036, %v2035
  %s2039 = scalar_lea.vmem %s0, 56
  %v2040 = vld [vmem:[%s2039] sm:$0x1]
  %s2041 = scalar_lea.vmem %s0, 183
  %v2042 = vld [vmem:[%s2041] sm:$0x2]
  %vm2043 = vcmask 1041409
  %v2044 = vsel %vm2043, %v2042, %v2040
  %s2045 = scalar_lea.vmem %s0, 310
  %v2046 = vld [vmem:[%s2045] sm:$0x4]
  %vm2047 = vcmask 1042434
  %v2048 = vsel %vm2047, %v2046, %v2044
  %s2049 = scalar_lea.vmem %s0, 437
  %v2050 = vld [vmem:[%s2049] sm:$0x8]
  %vm2051 = vcmask 1043459
  %v2052 = vsel %vm2051, %v2050, %v2048
  %s2053 = scalar_lea.vmem %s0, 564
  %v2054 = vld [vmem:[%s2053] sm:$0x10]
  %vm2055 = vcmask 1044484
  %v2056 = vsel %vm2055, %v2054, %v2052
  %2057 = vrot.lane.b32.xlu0 %v2056, 40
  %v2058 = vpop.permute.xlu0 %2057
  %vm2059 = vcmask 351552
  %s2060 = scalar_lea.vmem %s1, 8
  %2061 = vst.msk [vmem:[%s2060] sm:$0x1f] %vm2059, %v2058
  %s2062 = scalar_lea.vmem %s0, 13
  %v2063 = vld [vmem:[%s2062] sm:$0x1]
  %s2064 = scalar_lea.vmem %s0, 140
  %v2065 = vld [vmem:[%s2064] sm:$0x2]
  %vm2066 = vcmask 1041409
  %v2067 = vsel %vm2066, %v2065, %v2063
  %s2068 = scalar_lea.vmem %s0, 267
  %v2069 = vld [vmem:[%s2068] sm:$0x4]
  %vm2070 = vcmask 1042434
  %v2071 = vsel %vm2070, %v2069, %v2067
  %s2072 = scalar_lea.vmem %s0, 394
  %v2073 = vld [vmem:[%s2072] sm:$0x8]
  %vm2074 = vcmask 1043459
  %v2075 = vsel %vm2074, %v2073, %v2071
  %s2076 = scalar_lea.vmem %s0, 521
  %v2077 = vld [vmem:[%s2076] sm:$0x10]
  %vm2078 = vcmask 1044484
  %v2079 = vsel %vm2078, %v2077, %v2075
  %2080 = vrot.lane.b32.xlu0 %v2079, 39
  %v2081 = vpop.permute.xlu0 %2080
  %vm2082 = vcmask 343352
  %2083 = vst.msk [vmem:[%s1] sm:$0x1f] %vm2082, %v2081
  %s2084 = scalar_lea.vmem %s0, 98
  %v2085 = vld [vmem:[%s2084] sm:$0x1]
  %s2086 = scalar_lea.vmem %s0, 225
  %v2087 = vld [vmem:[%s2086] sm:$0x2]
  %vm2088 = vcmask 1041409
  %v2089 = vsel %vm2088, %v2087, %v2085
  %s2090 = scalar_lea.vmem %s0, 352
  %v2091 = vld [vmem:[%s2090] sm:$0x4]
  %vm2092 = vcmask 1042434
  %v2093 = vsel %vm2092, %v2091, %v2089
  %s2094 = scalar_lea.vmem %s0, 479
  %v2095 = vld [vmem:[%s2094] sm:$0x8]
  %vm2096 = vcmask 1043459
  %v2097 = vsel %vm2096, %v2095, %v2093
  %s2098 = scalar_lea.vmem %s0, 606
  %v2099 = vld [vmem:[%s2098] sm:$0x10]
  %vm2100 = vcmask 1044484
  %v2101 = vsel %vm2100, %v2099, %v2097
  %2102 = vrot.lane.b32.xlu0 %v2101, 38
  %v2103 = vpop.permute.xlu0 %2102
  %vm2104 = vcmask 335152
  %s2105 = scalar_lea.vmem %s1, 16
  %2106 = vst.msk [vmem:[%s2105] sm:$0x1f] %vm2104, %v2103
  %s2107 = scalar_lea.vmem %s0, 55
  %v2108 = vld [vmem:[%s2107] sm:$0x1]
  %s2109 = scalar_lea.vmem %s0, 182
  %v2110 = vld [vmem:[%s2109] sm:$0x2]
  %vm2111 = vcmask 1041409
  %v2112 = vsel %vm2111, %v2110, %v2108
  %s2113 = scalar_lea.vmem %s0, 309
  %v2114 = vld [vmem:[%s2113] sm:$0x4]
  %vm2115 = vcmask 1042434
  %v2116 = vsel %vm2115, %v2114, %v2112
  %s2117 = scalar_lea.vmem %s0, 436
  %v2118 = vld [vmem:[%s2117] sm:$0x8]
  %vm2119 = vcmask 1043459
  %v2120 = vsel %vm2119, %v2118, %v2116
  %s2121 = scalar_lea.vmem %s0, 563
  %v2122 = vld [vmem:[%s2121] sm:$0x10]
  %vm2123 = vcmask 1044484
  %v2124 = vsel %vm2123, %v2122, %v2120
  %2125 = vrot.lane.b32.xlu0 %v2124, 37
  %v2126 = vpop.permute.xlu0 %2125
  %vm2127 = vcmask 326952
  %s2128 = scalar_lea.vmem %s1, 8
  %2129 = vst.msk [vmem:[%s2128] sm:$0x1f] %vm2127, %v2126
  %s2130 = scalar_lea.vmem %s0, 12
  %v2131 = vld [vmem:[%s2130] sm:$0x1]
  %s2132 = scalar_lea.vmem %s0, 139
  %v2133 = vld [vmem:[%s2132] sm:$0x2]
  %vm2134 = vcmask 1041409
  %v2135 = vsel %vm2134, %v2133, %v2131
  %s2136 = scalar_lea.vmem %s0, 266
  %v2137 = vld [vmem:[%s2136] sm:$0x4]
  %vm2138 = vcmask 1042434
  %v2139 = vsel %vm2138, %v2137, %v2135
  %s2140 = scalar_lea.vmem %s0, 393
  %v2141 = vld [vmem:[%s2140] sm:$0x8]
  %vm2142 = vcmask 1043459
  %v2143 = vsel %vm2142, %v2141, %v2139
  %s2144 = scalar_lea.vmem %s0, 520
  %v2145 = vld [vmem:[%s2144] sm:$0x10]
  %vm2146 = vcmask 1044484
  %v2147 = vsel %vm2146, %v2145, %v2143
  %2148 = vrot.lane.b32.xlu0 %v2147, 36
  %v2149 = vpop.permute.xlu0 %2148
  %vm2150 = vcmask 318752
  %2151 = vst.msk [vmem:[%s1] sm:$0x1f] %vm2150, %v2149
  %s2152 = scalar_lea.vmem %s0, 97
  %v2153 = vld [vmem:[%s2152] sm:$0x1]
  %s2154 = scalar_lea.vmem %s0, 224
  %v2155 = vld [vmem:[%s2154] sm:$0x2]
  %vm2156 = vcmask 1041409
  %v2157 = vsel %vm2156, %v2155, %v2153
  %s2158 = scalar_lea.vmem %s0, 351
  %v2159 = vld [vmem:[%s2158] sm:$0x4]
  %vm2160 = vcmask 1042434
  %v2161 = vsel %vm2160, %v2159, %v2157
  %s2162 = scalar_lea.vmem %s0, 478
  %v2163 = vld [vmem:[%s2162] sm:$0x8]
  %vm2164 = vcmask 1043459
  %v2165 = vsel %vm2164, %v2163, %v2161
  %s2166 = scalar_lea.vmem %s0, 605
  %v2167 = vld [vmem:[%s2166] sm:$0x10]
  %vm2168 = vcmask 1044484
  %v2169 = vsel %vm2168, %v2167, %v2165
  %2170 = vrot.lane.b32.xlu0 %v2169, 35
  %v2171 = vpop.permute.xlu0 %2170
  %vm2172 = vcmask 310552
  %s2173 = scalar_lea.vmem %s1, 16
  %2174 = vst.msk [vmem:[%s2173] sm:$0x1f] %vm2172, %v2171
  %s2175 = scalar_lea.vmem %s0, 54
  %v2176 = vld [vmem:[%s2175] sm:$0x1]
  %s2177 = scalar_lea.vmem %s0, 181
  %v2178 = vld [vmem:[%s2177] sm:$0x2]
  %vm2179 = vcmask 1041409
  %v2180 = vsel %vm2179, %v2178, %v2176
  %s2181 = scalar_lea.vmem %s0, 308
  %v2182 = vld [vmem:[%s2181] sm:$0x4]
  %vm2183 = vcmask 1042434
  %v2184 = vsel %vm2183, %v2182, %v2180
  %s2185 = scalar_lea.vmem %s0, 435
  %v2186 = vld [vmem:[%s2185] sm:$0x8]
  %vm2187 = vcmask 1043459
  %v2188 = vsel %vm2187, %v2186, %v2184
  %s2189 = scalar_lea.vmem %s0, 562
  %v2190 = vld [vmem:[%s2189] sm:$0x10]
  %vm2191 = vcmask 1044484
  %v2192 = vsel %vm2191, %v2190, %v2188
  %2193 = vrot.lane.b32.xlu0 %v2192, 34
  %v2194 = vpop.permute.xlu0 %2193
  %vm2195 = vcmask 302352
  %s2196 = scalar_lea.vmem %s1, 8
  %2197 = vst.msk [vmem:[%s2196] sm:$0x1f] %vm2195, %v2194
  %s2198 = scalar_lea.vmem %s0, 11
  %v2199 = vld [vmem:[%s2198] sm:$0x1]
  %s2200 = scalar_lea.vmem %s0, 138
  %v2201 = vld [vmem:[%s2200] sm:$0x2]
  %vm2202 = vcmask 1041409
  %v2203 = vsel %vm2202, %v2201, %v2199
  %s2204 = scalar_lea.vmem %s0, 265
  %v2205 = vld [vmem:[%s2204] sm:$0x4]
  %vm2206 = vcmask 1042434
  %v2207 = vsel %vm2206, %v2205, %v2203
  %s2208 = scalar_lea.vmem %s0, 392
  %v2209 = vld [vmem:[%s2208] sm:$0x8]
  %vm2210 = vcmask 1043459
  %v2211 = vsel %vm2210, %v2209, %v2207
  %s2212 = scalar_lea.vmem %s0, 519
  %v2213 = vld [vmem:[%s2212] sm:$0x10]
  %vm2214 = vcmask 1044484
  %v2215 = vsel %vm2214, %v2213, %v2211
  %2216 = vrot.lane.b32.xlu0 %v2215, 33
  %v2217 = vpop.permute.xlu0 %2216
  %vm2218 = vcmask 294152
  %2219 = vst.msk [vmem:[%s1] sm:$0x1f] %vm2218, %v2217
  %s2220 = scalar_lea.vmem %s0, 96
  %v2221 = vld [vmem:[%s2220] sm:$0x1]
  %s2222 = scalar_lea.vmem %s0, 223
  %v2223 = vld [vmem:[%s2222] sm:$0x2]
  %vm2224 = vcmask 1041409
  %v2225 = vsel %vm2224, %v2223, %v2221
  %s2226 = scalar_lea.vmem %s0, 350
  %v2227 = vld [vmem:[%s2226] sm:$0x4]
  %vm2228 = vcmask 1042434
  %v2229 = vsel %vm2228, %v2227, %v2225
  %s2230 = scalar_lea.vmem %s0, 477
  %v2231 = vld [vmem:[%s2230] sm:$0x8]
  %vm2232 = vcmask 1043459
  %v2233 = vsel %vm2232, %v2231, %v2229
  %s2234 = scalar_lea.vmem %s0, 604
  %v2235 = vld [vmem:[%s2234] sm:$0x10]
  %vm2236 = vcmask 1044484
  %v2237 = vsel %vm2236, %v2235, %v2233
  %2238 = vrot.lane.b32.xlu0 %v2237, 32
  %v2239 = vpop.permute.xlu0 %2238
  %vm2240 = vcmask 285952
  %s2241 = scalar_lea.vmem %s1, 16
  %2242 = vst.msk [vmem:[%s2241] sm:$0x1f] %vm2240, %v2239
  %s2243 = scalar_lea.vmem %s0, 53
  %v2244 = vld [vmem:[%s2243] sm:$0x1]
  %s2245 = scalar_lea.vmem %s0, 180
  %v2246 = vld [vmem:[%s2245] sm:$0x2]
  %vm2247 = vcmask 1041409
  %v2248 = vsel %vm2247, %v2246, %v2244
  %s2249 = scalar_lea.vmem %s0, 307
  %v2250 = vld [vmem:[%s2249] sm:$0x4]
  %vm2251 = vcmask 1042434
  %v2252 = vsel %vm2251, %v2250, %v2248
  %s2253 = scalar_lea.vmem %s0, 434
  %v2254 = vld [vmem:[%s2253] sm:$0x8]
  %vm2255 = vcmask 1043459
  %v2256 = vsel %vm2255, %v2254, %v2252
  %s2257 = scalar_lea.vmem %s0, 561
  %v2258 = vld [vmem:[%s2257] sm:$0x10]
  %vm2259 = vcmask 1044484
  %v2260 = vsel %vm2259, %v2258, %v2256
  %2261 = vrot.lane.b32.xlu0 %v2260, 31
  %v2262 = vpop.permute.xlu0 %2261
  %vm2263 = vcmask 277752
  %s2264 = scalar_lea.vmem %s1, 8
  %2265 = vst.msk [vmem:[%s2264] sm:$0x1f] %vm2263, %v2262
  %s2266 = scalar_lea.vmem %s0, 10
  %v2267 = vld [vmem:[%s2266] sm:$0x1]
  %s2268 = scalar_lea.vmem %s0, 137
  %v2269 = vld [vmem:[%s2268] sm:$0x2]
  %vm2270 = vcmask 1041409
  %v2271 = vsel %vm2270, %v2269, %v2267
  %s2272 = scalar_lea.vmem %s0, 264
  %v2273 = vld [vmem:[%s2272] sm:$0x4]
  %vm2274 = vcmask 1042434
  %v2275 = vsel %vm2274, %v2273, %v2271
  %s2276 = scalar_lea.vmem %s0, 391
  %v2277 = vld [vmem:[%s2276] sm:$0x8]
  %vm2278 = vcmask 1043459
  %v2279 = vsel %vm2278, %v2277, %v2275
  %s2280 = scalar_lea.vmem %s0, 518
  %v2281 = vld [vmem:[%s2280] sm:$0x10]
  %vm2282 = vcmask 1044484
  %v2283 = vsel %vm2282, %v2281, %v2279
  %2284 = vrot.lane.b32.xlu0 %v2283, 30
  %v2285 = vpop.permute.xlu0 %2284
  %vm2286 = vcmask 269552
  %2287 = vst.msk [vmem:[%s1] sm:$0x1f] %vm2286, %v2285
  %s2288 = scalar_lea.vmem %s0, 95
  %v2289 = vld [vmem:[%s2288] sm:$0x1]
  %s2290 = scalar_lea.vmem %s0, 222
  %v2291 = vld [vmem:[%s2290] sm:$0x2]
  %vm2292 = vcmask 1041409
  %v2293 = vsel %vm2292, %v2291, %v2289
  %s2294 = scalar_lea.vmem %s0, 349
  %v2295 = vld [vmem:[%s2294] sm:$0x4]
  %vm2296 = vcmask 1042434
  %v2297 = vsel %vm2296, %v2295, %v2293
  %s2298 = scalar_lea.vmem %s0, 476
  %v2299 = vld [vmem:[%s2298] sm:$0x8]
  %vm2300 = vcmask 1043459
  %v2301 = vsel %vm2300, %v2299, %v2297
  %s2302 = scalar_lea.vmem %s0, 603
  %v2303 = vld [vmem:[%s2302] sm:$0x10]
  %vm2304 = vcmask 1044484
  %v2305 = vsel %vm2304, %v2303, %v2301
  %2306 = vrot.lane.b32.xlu0 %v2305, 29
  %v2307 = vpop.permute.xlu0 %2306
  %vm2308 = vcmask 261352
  %s2309 = scalar_lea.vmem %s1, 16
  %2310 = vst.msk [vmem:[%s2309] sm:$0x1f] %vm2308, %v2307
  %s2311 = scalar_lea.vmem %s0, 52
  %v2312 = vld [vmem:[%s2311] sm:$0x1]
  %s2313 = scalar_lea.vmem %s0, 179
  %v2314 = vld [vmem:[%s2313] sm:$0x2]
  %vm2315 = vcmask 1041409
  %v2316 = vsel %vm2315, %v2314, %v2312
  %s2317 = scalar_lea.vmem %s0, 306
  %v2318 = vld [vmem:[%s2317] sm:$0x4]
  %vm2319 = vcmask 1042434
  %v2320 = vsel %vm2319, %v2318, %v2316
  %s2321 = scalar_lea.vmem %s0, 433
  %v2322 = vld [vmem:[%s2321] sm:$0x8]
  %vm2323 = vcmask 1043459
  %v2324 = vsel %vm2323, %v2322, %v2320
  %s2325 = scalar_lea.vmem %s0, 560
  %v2326 = vld [vmem:[%s2325] sm:$0x10]
  %vm2327 = vcmask 1044484
  %v2328 = vsel %vm2327, %v2326, %v2324
  %2329 = vrot.lane.b32.xlu0 %v2328, 28
  %v2330 = vpop.permute.xlu0 %2329
  %vm2331 = vcmask 253152
  %s2332 = scalar_lea.vmem %s1, 8
  %2333 = vst.msk [vmem:[%s2332] sm:$0x1f] %vm2331, %v2330
  %s2334 = scalar_lea.vmem %s0, 9
  %v2335 = vld [vmem:[%s2334] sm:$0x1]
  %s2336 = scalar_lea.vmem %s0, 136
  %v2337 = vld [vmem:[%s2336] sm:$0x2]
  %vm2338 = vcmask 1041409
  %v2339 = vsel %vm2338, %v2337, %v2335
  %s2340 = scalar_lea.vmem %s0, 263
  %v2341 = vld [vmem:[%s2340] sm:$0x4]
  %vm2342 = vcmask 1042434
  %v2343 = vsel %vm2342, %v2341, %v2339
  %s2344 = scalar_lea.vmem %s0, 390
  %v2345 = vld [vmem:[%s2344] sm:$0x8]
  %vm2346 = vcmask 1043459
  %v2347 = vsel %vm2346, %v2345, %v2343
  %s2348 = scalar_lea.vmem %s0, 517
  %v2349 = vld [vmem:[%s2348] sm:$0x10]
  %vm2350 = vcmask 1044484
  %v2351 = vsel %vm2350, %v2349, %v2347
  %2352 = vrot.lane.b32.xlu0 %v2351, 27
  %v2353 = vpop.permute.xlu0 %2352
  %vm2354 = vcmask 244952
  %2355 = vst.msk [vmem:[%s1] sm:$0x1f] %vm2354, %v2353
  %s2356 = scalar_lea.vmem %s0, 94
  %v2357 = vld [vmem:[%s2356] sm:$0x1]
  %s2358 = scalar_lea.vmem %s0, 221
  %v2359 = vld [vmem:[%s2358] sm:$0x2]
  %vm2360 = vcmask 1041409
  %v2361 = vsel %vm2360, %v2359, %v2357
  %s2362 = scalar_lea.vmem %s0, 348
  %v2363 = vld [vmem:[%s2362] sm:$0x4]
  %vm2364 = vcmask 1042434
  %v2365 = vsel %vm2364, %v2363, %v2361
  %s2366 = scalar_lea.vmem %s0, 475
  %v2367 = vld [vmem:[%s2366] sm:$0x8]
  %vm2368 = vcmask 1043459
  %v2369 = vsel %vm2368, %v2367, %v2365
  %s2370 = scalar_lea.vmem %s0, 602
  %v2371 = vld [vmem:[%s2370] sm:$0x10]
  %vm2372 = vcmask 1044484
  %v2373 = vsel %vm2372, %v2371, %v2369
  %2374 = vrot.lane.b32.xlu0 %v2373, 26
  %v2375 = vpop.permute.xlu0 %2374
  %vm2376 = vcmask 236752
  %s2377 = scalar_lea.vmem %s1, 16
  %2378 = vst.msk [vmem:[%s2377] sm:$0x1f] %vm2376, %v2375
  %s2379 = scalar_lea.vmem %s0, 51
  %v2380 = vld [vmem:[%s2379] sm:$0x1]
  %s2381 = scalar_lea.vmem %s0, 178
  %v2382 = vld [vmem:[%s2381] sm:$0x2]
  %vm2383 = vcmask 1041409
  %v2384 = vsel %vm2383, %v2382, %v2380
  %s2385 = scalar_lea.vmem %s0, 305
  %v2386 = vld [vmem:[%s2385] sm:$0x4]
  %vm2387 = vcmask 1042434
  %v2388 = vsel %vm2387, %v2386, %v2384
  %s2389 = scalar_lea.vmem %s0, 432
  %v2390 = vld [vmem:[%s2389] sm:$0x8]
  %vm2391 = vcmask 1043459
  %v2392 = vsel %vm2391, %v2390, %v2388
  %s2393 = scalar_lea.vmem %s0, 559
  %v2394 = vld [vmem:[%s2393] sm:$0x10]
  %vm2395 = vcmask 1044484
  %v2396 = vsel %vm2395, %v2394, %v2392
  %2397 = vrot.lane.b32.xlu0 %v2396, 25
  %v2398 = vpop.permute.xlu0 %2397
  %vm2399 = vcmask 228552
  %s2400 = scalar_lea.vmem %s1, 8
  %2401 = vst.msk [vmem:[%s2400] sm:$0x1f] %vm2399, %v2398
  %s2402 = scalar_lea.vmem %s0, 8
  %v2403 = vld [vmem:[%s2402] sm:$0x1]
  %s2404 = scalar_lea.vmem %s0, 135
  %v2405 = vld [vmem:[%s2404] sm:$0x2]
  %vm2406 = vcmask 1041409
  %v2407 = vsel %vm2406, %v2405, %v2403
  %s2408 = scalar_lea.vmem %s0, 262
  %v2409 = vld [vmem:[%s2408] sm:$0x4]
  %vm2410 = vcmask 1042434
  %v2411 = vsel %vm2410, %v2409, %v2407
  %s2412 = scalar_lea.vmem %s0, 389
  %v2413 = vld [vmem:[%s2412] sm:$0x8]
  %vm2414 = vcmask 1043459
  %v2415 = vsel %vm2414, %v2413, %v2411
  %s2416 = scalar_lea.vmem %s0, 516
  %v2417 = vld [vmem:[%s2416] sm:$0x10]
  %vm2418 = vcmask 1044484
  %v2419 = vsel %vm2418, %v2417, %v2415
  %2420 = vrot.lane.b32.xlu0 %v2419, 24
  %v2421 = vpop.permute.xlu0 %2420
  %vm2422 = vcmask 220352
  %2423 = vst.msk [vmem:[%s1] sm:$0x1f] %vm2422, %v2421
  %s2424 = scalar_lea.vmem %s0, 93
  %v2425 = vld [vmem:[%s2424] sm:$0x1]
  %s2426 = scalar_lea.vmem %s0, 220
  %v2427 = vld [vmem:[%s2426] sm:$0x2]
  %vm2428 = vcmask 1041409
  %v2429 = vsel %vm2428, %v2427, %v2425
  %s2430 = scalar_lea.vmem %s0, 347
  %v2431 = vld [vmem:[%s2430] sm:$0x4]
  %vm2432 = vcmask 1042434
  %v2433 = vsel %vm2432, %v2431, %v2429
  %s2434 = scalar_lea.vmem %s0, 474
  %v2435 = vld [vmem:[%s2434] sm:$0x8]
  %vm2436 = vcmask 1043459
  %v2437 = vsel %vm2436, %v2435, %v2433
  %s2438 = scalar_lea.vmem %s0, 601
  %v2439 = vld [vmem:[%s2438] sm:$0x10]
  %vm2440 = vcmask 1044484
  %v2441 = vsel %vm2440, %v2439, %v2437
  %2442 = vrot.lane.b32.xlu0 %v2441, 23
  %v2443 = vpop.permute.xlu0 %2442
  %vm2444 = vcmask 212152
  %s2445 = scalar_lea.vmem %s1, 16
  %2446 = vst.msk [vmem:[%s2445] sm:$0x1f] %vm2444, %v2443
  %s2447 = scalar_lea.vmem %s0, 50
  %v2448 = vld [vmem:[%s2447] sm:$0x1]
  %s2449 = scalar_lea.vmem %s0, 177
  %v2450 = vld [vmem:[%s2449] sm:$0x2]
  %vm2451 = vcmask 1041409
  %v2452 = vsel %vm2451, %v2450, %v2448
  %s2453 = scalar_lea.vmem %s0, 304
  %v2454 = vld [vmem:[%s2453] sm:$0x4]
  %vm2455 = vcmask 1042434
  %v2456 = vsel %vm2455, %v2454, %v2452
  %s2457 = scalar_lea.vmem %s0, 431
  %v2458 = vld [vmem:[%s2457] sm:$0x8]
  %vm2459 = vcmask 1043459
  %v2460 = vsel %vm2459, %v2458, %v2456
  %s2461 = scalar_lea.vmem %s0, 558
  %v2462 = vld [vmem:[%s2461] sm:$0x10]
  %vm2463 = vcmask 1044484
  %v2464 = vsel %vm2463, %v2462, %v2460
  %2465 = vrot.lane.b32.xlu0 %v2464, 22
  %v2466 = vpop.permute.xlu0 %2465
  %vm2467 = vcmask 203952
  %s2468 = scalar_lea.vmem %s1, 8
  %2469 = vst.msk [vmem:[%s2468] sm:$0x1f] %vm2467, %v2466
  %s2470 = scalar_lea.vmem %s0, 7
  %v2471 = vld [vmem:[%s2470] sm:$0x1]
  %s2472 = scalar_lea.vmem %s0, 134
  %v2473 = vld [vmem:[%s2472] sm:$0x2]
  %vm2474 = vcmask 1041409
  %v2475 = vsel %vm2474, %v2473, %v2471
  %s2476 = scalar_lea.vmem %s0, 261
  %v2477 = vld [vmem:[%s2476] sm:$0x4]
  %vm2478 = vcmask 1042434
  %v2479 = vsel %vm2478, %v2477, %v2475
  %s2480 = scalar_lea.vmem %s0, 388
  %v2481 = vld [vmem:[%s2480] sm:$0x8]
  %vm2482 = vcmask 1043459
  %v2483 = vsel %vm2482, %v2481, %v2479
  %s2484 = scalar_lea.vmem %s0, 515
  %v2485 = vld [vmem:[%s2484] sm:$0x10]
  %vm2486 = vcmask 1044484
  %v2487 = vsel %vm2486, %v2485, %v2483
  %2488 = vrot.lane.b32.xlu0 %v2487, 21
  %v2489 = vpop.permute.xlu0 %2488
  %vm2490 = vcmask 195752
  %2491 = vst.msk [vmem:[%s1] sm:$0x1f] %vm2490, %v2489
  %s2492 = scalar_lea.vmem %s0, 92
  %v2493 = vld [vmem:[%s2492] sm:$0x1]
  %s2494 = scalar_lea.vmem %s0, 219
  %v2495 = vld [vmem:[%s2494] sm:$0x2]
  %vm2496 = vcmask 1041409
  %v2497 = vsel %vm2496, %v2495, %v2493
  %s2498 = scalar_lea.vmem %s0, 346
  %v2499 = vld [vmem:[%s2498] sm:$0x4]
  %vm2500 = vcmask 1042434
  %v2501 = vsel %vm2500, %v2499, %v2497
  %s2502 = scalar_lea.vmem %s0, 473
  %v2503 = vld [vmem:[%s2502] sm:$0x8]
  %vm2504 = vcmask 1043459
  %v2505 = vsel %vm2504, %v2503, %v2501
  %s2506 = scalar_lea.vmem %s0, 600
  %v2507 = vld [vmem:[%s2506] sm:$0x10]
  %vm2508 = vcmask 1044484
  %v2509 = vsel %vm2508, %v2507, %v2505
  %2510 = vrot.lane.b32.xlu0 %v2509, 20
  %v2511 = vpop.permute.xlu0 %2510
  %vm2512 = vcmask 187552
  %s2513 = scalar_lea.vmem %s1, 16
  %2514 = vst.msk [vmem:[%s2513] sm:$0x1f] %vm2512, %v2511
  %s2515 = scalar_lea.vmem %s0, 49
  %v2516 = vld [vmem:[%s2515] sm:$0x1]
  %s2517 = scalar_lea.vmem %s0, 176
  %v2518 = vld [vmem:[%s2517] sm:$0x2]
  %vm2519 = vcmask 1041409
  %v2520 = vsel %vm2519, %v2518, %v2516
  %s2521 = scalar_lea.vmem %s0, 303
  %v2522 = vld [vmem:[%s2521] sm:$0x4]
  %vm2523 = vcmask 1042434
  %v2524 = vsel %vm2523, %v2522, %v2520
  %s2525 = scalar_lea.vmem %s0, 430
  %v2526 = vld [vmem:[%s2525] sm:$0x8]
  %vm2527 = vcmask 1043459
  %v2528 = vsel %vm2527, %v2526, %v2524
  %s2529 = scalar_lea.vmem %s0, 557
  %v2530 = vld [vmem:[%s2529] sm:$0x10]
  %vm2531 = vcmask 1044484
  %v2532 = vsel %vm2531, %v2530, %v2528
  %2533 = vrot.lane.b32.xlu0 %v2532, 19
  %v2534 = vpop.permute.xlu0 %2533
  %vm2535 = vcmask 179352
  %s2536 = scalar_lea.vmem %s1, 8
  %2537 = vst.msk [vmem:[%s2536] sm:$0x1f] %vm2535, %v2534
  %s2538 = scalar_lea.vmem %s0, 6
  %v2539 = vld [vmem:[%s2538] sm:$0x1]
  %s2540 = scalar_lea.vmem %s0, 133
  %v2541 = vld [vmem:[%s2540] sm:$0x2]
  %vm2542 = vcmask 1041409
  %v2543 = vsel %vm2542, %v2541, %v2539
  %s2544 = scalar_lea.vmem %s0, 260
  %v2545 = vld [vmem:[%s2544] sm:$0x4]
  %vm2546 = vcmask 1042434
  %v2547 = vsel %vm2546, %v2545, %v2543
  %s2548 = scalar_lea.vmem %s0, 387
  %v2549 = vld [vmem:[%s2548] sm:$0x8]
  %vm2550 = vcmask 1043459
  %v2551 = vsel %vm2550, %v2549, %v2547
  %s2552 = scalar_lea.vmem %s0, 514
  %v2553 = vld [vmem:[%s2552] sm:$0x10]
  %vm2554 = vcmask 1044484
  %v2555 = vsel %vm2554, %v2553, %v2551
  %2556 = vrot.lane.b32.xlu0 %v2555, 18
  %v2557 = vpop.permute.xlu0 %2556
  %vm2558 = vcmask 171152
  %2559 = vst.msk [vmem:[%s1] sm:$0x1f] %vm2558, %v2557
  %s2560 = scalar_lea.vmem %s0, 91
  %v2561 = vld [vmem:[%s2560] sm:$0x1]
  %s2562 = scalar_lea.vmem %s0, 218
  %v2563 = vld [vmem:[%s2562] sm:$0x2]
  %vm2564 = vcmask 1041409
  %v2565 = vsel %vm2564, %v2563, %v2561
  %s2566 = scalar_lea.vmem %s0, 345
  %v2567 = vld [vmem:[%s2566] sm:$0x4]
  %vm2568 = vcmask 1042434
  %v2569 = vsel %vm2568, %v2567, %v2565
  %s2570 = scalar_lea.vmem %s0, 472
  %v2571 = vld [vmem:[%s2570] sm:$0x8]
  %vm2572 = vcmask 1043459
  %v2573 = vsel %vm2572, %v2571, %v2569
  %s2574 = scalar_lea.vmem %s0, 599
  %v2575 = vld [vmem:[%s2574] sm:$0x10]
  %vm2576 = vcmask 1044484
  %v2577 = vsel %vm2576, %v2575, %v2573
  %2578 = vrot.lane.b32.xlu0 %v2577, 17
  %v2579 = vpop.permute.xlu0 %2578
  %vm2580 = vcmask 162952
  %s2581 = scalar_lea.vmem %s1, 16
  %2582 = vst.msk [vmem:[%s2581] sm:$0x1f] %vm2580, %v2579
  %s2583 = scalar_lea.vmem %s0, 48
  %v2584 = vld [vmem:[%s2583] sm:$0x1]
  %s2585 = scalar_lea.vmem %s0, 175
  %v2586 = vld [vmem:[%s2585] sm:$0x2]
  %vm2587 = vcmask 1041409
  %v2588 = vsel %vm2587, %v2586, %v2584
  %s2589 = scalar_lea.vmem %s0, 302
  %v2590 = vld [vmem:[%s2589] sm:$0x4]
  %vm2591 = vcmask 1042434
  %v2592 = vsel %vm2591, %v2590, %v2588
  %s2593 = scalar_lea.vmem %s0, 429
  %v2594 = vld [vmem:[%s2593] sm:$0x8]
  %vm2595 = vcmask 1043459
  %v2596 = vsel %vm2595, %v2594, %v2592
  %s2597 = scalar_lea.vmem %s0, 556
  %v2598 = vld [vmem:[%s2597] sm:$0x10]
  %vm2599 = vcmask 1044484
  %v2600 = vsel %vm2599, %v2598, %v2596
  %2601 = vrot.lane.b32.xlu0 %v2600, 16
  %v2602 = vpop.permute.xlu0 %2601
  %vm2603 = vcmask 154752
  %s2604 = scalar_lea.vmem %s1, 8
  %2605 = vst.msk [vmem:[%s2604] sm:$0x1f] %vm2603, %v2602
  %s2606 = scalar_lea.vmem %s0, 5
  %v2607 = vld [vmem:[%s2606] sm:$0x1]
  %s2608 = scalar_lea.vmem %s0, 132
  %v2609 = vld [vmem:[%s2608] sm:$0x2]
  %vm2610 = vcmask 1041409
  %v2611 = vsel %vm2610, %v2609, %v2607
  %s2612 = scalar_lea.vmem %s0, 259
  %v2613 = vld [vmem:[%s2612] sm:$0x4]
  %vm2614 = vcmask 1042434
  %v2615 = vsel %vm2614, %v2613, %v2611
  %s2616 = scalar_lea.vmem %s0, 386
  %v2617 = vld [vmem:[%s2616] sm:$0x8]
  %vm2618 = vcmask 1043459
  %v2619 = vsel %vm2618, %v2617, %v2615
  %s2620 = scalar_lea.vmem %s0, 513
  %v2621 = vld [vmem:[%s2620] sm:$0x10]
  %vm2622 = vcmask 1044484
  %v2623 = vsel %vm2622, %v2621, %v2619
  %2624 = vrot.lane.b32.xlu0 %v2623, 15
  %v2625 = vpop.permute.xlu0 %2624
  %vm2626 = vcmask 146552
  %2627 = vst.msk [vmem:[%s1] sm:$0x1f] %vm2626, %v2625
  %s2628 = scalar_lea.vmem %s0, 90
  %v2629 = vld [vmem:[%s2628] sm:$0x1]
  %s2630 = scalar_lea.vmem %s0, 217
  %v2631 = vld [vmem:[%s2630] sm:$0x2]
  %vm2632 = vcmask 1041409
  %v2633 = vsel %vm2632, %v2631, %v2629
  %s2634 = scalar_lea.vmem %s0, 344
  %v2635 = vld [vmem:[%s2634] sm:$0x4]
  %vm2636 = vcmask 1042434
  %v2637 = vsel %vm2636, %v2635, %v2633
  %s2638 = scalar_lea.vmem %s0, 471
  %v2639 = vld [vmem:[%s2638] sm:$0x8]
  %vm2640 = vcmask 1043459
  %v2641 = vsel %vm2640, %v2639, %v2637
  %s2642 = scalar_lea.vmem %s0, 598
  %v2643 = vld [vmem:[%s2642] sm:$0x10]
  %vm2644 = vcmask 1044484
  %v2645 = vsel %vm2644, %v2643, %v2641
  %2646 = vrot.lane.b32.xlu0 %v2645, 14
  %v2647 = vpop.permute.xlu0 %2646
  %vm2648 = vcmask 138352
  %s2649 = scalar_lea.vmem %s1, 16
  %2650 = vst.msk [vmem:[%s2649] sm:$0x1f] %vm2648, %v2647
  %s2651 = scalar_lea.vmem %s0, 47
  %v2652 = vld [vmem:[%s2651] sm:$0x1]
  %s2653 = scalar_lea.vmem %s0, 174
  %v2654 = vld [vmem:[%s2653] sm:$0x2]
  %vm2655 = vcmask 1041409
  %v2656 = vsel %vm2655, %v2654, %v2652
  %s2657 = scalar_lea.vmem %s0, 301
  %v2658 = vld [vmem:[%s2657] sm:$0x4]
  %vm2659 = vcmask 1042434
  %v2660 = vsel %vm2659, %v2658, %v2656
  %s2661 = scalar_lea.vmem %s0, 428
  %v2662 = vld [vmem:[%s2661] sm:$0x8]
  %vm2663 = vcmask 1043459
  %v2664 = vsel %vm2663, %v2662, %v2660
  %s2665 = scalar_lea.vmem %s0, 555
  %v2666 = vld [vmem:[%s2665] sm:$0x10]
  %vm2667 = vcmask 1044484
  %v2668 = vsel %vm2667, %v2666, %v2664
  %2669 = vrot.lane.b32.xlu0 %v2668, 13
  %v2670 = vpop.permute.xlu0 %2669
  %vm2671 = vcmask 130152
  %s2672 = scalar_lea.vmem %s1, 8
  %2673 = vst.msk [vmem:[%s2672] sm:$0x1f] %vm2671, %v2670
  %s2674 = scalar_lea.vmem %s0, 4
  %v2675 = vld [vmem:[%s2674] sm:$0x1]
  %s2676 = scalar_lea.vmem %s0, 131
  %v2677 = vld [vmem:[%s2676] sm:$0x2]
  %vm2678 = vcmask 1041409
  %v2679 = vsel %vm2678, %v2677, %v2675
  %s2680 = scalar_lea.vmem %s0, 258
  %v2681 = vld [vmem:[%s2680] sm:$0x4]
  %vm2682 = vcmask 1042434
  %v2683 = vsel %vm2682, %v2681, %v2679
  %s2684 = scalar_lea.vmem %s0, 385
  %v2685 = vld [vmem:[%s2684] sm:$0x8]
  %vm2686 = vcmask 1043459
  %v2687 = vsel %vm2686, %v2685, %v2683
  %s2688 = scalar_lea.vmem %s0, 512
  %v2689 = vld [vmem:[%s2688] sm:$0x10]
  %vm2690 = vcmask 1044484
  %v2691 = vsel %vm2690, %v2689, %v2687
  %2692 = vrot.lane.b32.xlu0 %v2691, 12
  %v2693 = vpop.permute.xlu0 %2692
  %vm2694 = vcmask 121952
  %2695 = vst.msk [vmem:[%s1] sm:$0x1f] %vm2694, %v2693
  %s2696 = scalar_lea.vmem %s0, 89
  %v2697 = vld [vmem:[%s2696] sm:$0x1]
  %s2698 = scalar_lea.vmem %s0, 216
  %v2699 = vld [vmem:[%s2698] sm:$0x2]
  %vm2700 = vcmask 1041409
  %v2701 = vsel %vm2700, %v2699, %v2697
  %s2702 = scalar_lea.vmem %s0, 343
  %v2703 = vld [vmem:[%s2702] sm:$0x4]
  %vm2704 = vcmask 1042434
  %v2705 = vsel %vm2704, %v2703, %v2701
  %s2706 = scalar_lea.vmem %s0, 470
  %v2707 = vld [vmem:[%s2706] sm:$0x8]
  %vm2708 = vcmask 1043459
  %v2709 = vsel %vm2708, %v2707, %v2705
  %s2710 = scalar_lea.vmem %s0, 597
  %v2711 = vld [vmem:[%s2710] sm:$0x10]
  %vm2712 = vcmask 1044484
  %v2713 = vsel %vm2712, %v2711, %v2709
  %2714 = vrot.lane.b32.xlu0 %v2713, 11
  %v2715 = vpop.permute.xlu0 %2714
  %vm2716 = vcmask 113752
  %s2717 = scalar_lea.vmem %s1, 16
  %2718 = vst.msk [vmem:[%s2717] sm:$0x1f] %vm2716, %v2715
  %s2719 = scalar_lea.vmem %s0, 46
  %v2720 = vld [vmem:[%s2719] sm:$0x1]
  %s2721 = scalar_lea.vmem %s0, 173
  %v2722 = vld [vmem:[%s2721] sm:$0x2]
  %vm2723 = vcmask 1041409
  %v2724 = vsel %vm2723, %v2722, %v2720
  %s2725 = scalar_lea.vmem %s0, 300
  %v2726 = vld [vmem:[%s2725] sm:$0x4]
  %vm2727 = vcmask 1042434
  %v2728 = vsel %vm2727, %v2726, %v2724
  %s2729 = scalar_lea.vmem %s0, 427
  %v2730 = vld [vmem:[%s2729] sm:$0x8]
  %vm2731 = vcmask 1043459
  %v2732 = vsel %vm2731, %v2730, %v2728
  %s2733 = scalar_lea.vmem %s0, 554
  %v2734 = vld [vmem:[%s2733] sm:$0x10]
  %vm2735 = vcmask 1044484
  %v2736 = vsel %vm2735, %v2734, %v2732
  %2737 = vrot.lane.b32.xlu0 %v2736, 10
  %v2738 = vpop.permute.xlu0 %2737
  %vm2739 = vcmask 105552
  %s2740 = scalar_lea.vmem %s1, 8
  %2741 = vst.msk [vmem:[%s2740] sm:$0x1f] %vm2739, %v2738
  %s2742 = scalar_lea.vmem %s0, 3
  %v2743 = vld [vmem:[%s2742] sm:$0x1]
  %s2744 = scalar_lea.vmem %s0, 130
  %v2745 = vld [vmem:[%s2744] sm:$0x2]
  %vm2746 = vcmask 1041409
  %v2747 = vsel %vm2746, %v2745, %v2743
  %s2748 = scalar_lea.vmem %s0, 257
  %v2749 = vld [vmem:[%s2748] sm:$0x4]
  %vm2750 = vcmask 1042434
  %v2751 = vsel %vm2750, %v2749, %v2747
  %s2752 = scalar_lea.vmem %s0, 384
  %v2753 = vld [vmem:[%s2752] sm:$0x8]
  %vm2754 = vcmask 1043459
  %v2755 = vsel %vm2754, %v2753, %v2751
  %s2756 = scalar_lea.vmem %s0, 511
  %v2757 = vld [vmem:[%s2756] sm:$0x10]
  %vm2758 = vcmask 1044484
  %v2759 = vsel %vm2758, %v2757, %v2755
  %2760 = vrot.lane.b32.xlu0 %v2759, 9
  %v2761 = vpop.permute.xlu0 %2760
  %vm2762 = vcmask 97352
  %2763 = vst.msk [vmem:[%s1] sm:$0x1f] %vm2762, %v2761
  %s2764 = scalar_lea.vmem %s0, 88
  %v2765 = vld [vmem:[%s2764] sm:$0x1]
  %s2766 = scalar_lea.vmem %s0, 215
  %v2767 = vld [vmem:[%s2766] sm:$0x2]
  %vm2768 = vcmask 1041409
  %v2769 = vsel %vm2768, %v2767, %v2765
  %s2770 = scalar_lea.vmem %s0, 342
  %v2771 = vld [vmem:[%s2770] sm:$0x4]
  %vm2772 = vcmask 1042434
  %v2773 = vsel %vm2772, %v2771, %v2769
  %s2774 = scalar_lea.vmem %s0, 469
  %v2775 = vld [vmem:[%s2774] sm:$0x8]
  %vm2776 = vcmask 1043459
  %v2777 = vsel %vm2776, %v2775, %v2773
  %s2778 = scalar_lea.vmem %s0, 596
  %v2779 = vld [vmem:[%s2778] sm:$0x10]
  %vm2780 = vcmask 1044484
  %v2781 = vsel %vm2780, %v2779, %v2777
  %2782 = vrot.lane.b32.xlu0 %v2781, 8
  %v2783 = vpop.permute.xlu0 %2782
  %vm2784 = vcmask 89152
  %s2785 = scalar_lea.vmem %s1, 16
  %2786 = vst.msk [vmem:[%s2785] sm:$0x1f] %vm2784, %v2783
  %s2787 = scalar_lea.vmem %s0, 45
  %v2788 = vld [vmem:[%s2787] sm:$0x1]
  %s2789 = scalar_lea.vmem %s0, 172
  %v2790 = vld [vmem:[%s2789] sm:$0x2]
  %vm2791 = vcmask 1041409
  %v2792 = vsel %vm2791, %v2790, %v2788
  %s2793 = scalar_lea.vmem %s0, 299
  %v2794 = vld [vmem:[%s2793] sm:$0x4]
  %vm2795 = vcmask 1042434
  %v2796 = vsel %vm2795, %v2794, %v2792
  %s2797 = scalar_lea.vmem %s0, 426
  %v2798 = vld [vmem:[%s2797] sm:$0x8]
  %vm2799 = vcmask 1043459
  %v2800 = vsel %vm2799, %v2798, %v2796
  %s2801 = scalar_lea.vmem %s0, 553
  %v2802 = vld [vmem:[%s2801] sm:$0x10]
  %vm2803 = vcmask 1044484
  %v2804 = vsel %vm2803, %v2802, %v2800
  %2805 = vrot.lane.b32.xlu0 %v2804, 7
  %v2806 = vpop.permute.xlu0 %2805
  %vm2807 = vcmask 80952
  %s2808 = scalar_lea.vmem %s1, 8
  %2809 = vst.msk [vmem:[%s2808] sm:$0x1f] %vm2807, %v2806
  %s2810 = scalar_lea.vmem %s0, 2
  %v2811 = vld [vmem:[%s2810] sm:$0x1]
  %s2812 = scalar_lea.vmem %s0, 129
  %v2813 = vld [vmem:[%s2812] sm:$0x2]
  %vm2814 = vcmask 1041409
  %v2815 = vsel %vm2814, %v2813, %v2811
  %s2816 = scalar_lea.vmem %s0, 256
  %v2817 = vld [vmem:[%s2816] sm:$0x4]
  %vm2818 = vcmask 1042434
  %v2819 = vsel %vm2818, %v2817, %v2815
  %s2820 = scalar_lea.vmem %s0, 383
  %v2821 = vld [vmem:[%s2820] sm:$0x8]
  %vm2822 = vcmask 1043459
  %v2823 = vsel %vm2822, %v2821, %v2819
  %s2824 = scalar_lea.vmem %s0, 510
  %v2825 = vld [vmem:[%s2824] sm:$0x10]
  %vm2826 = vcmask 1044484
  %v2827 = vsel %vm2826, %v2825, %v2823
  %2828 = vrot.lane.b32.xlu0 %v2827, 6
  %v2829 = vpop.permute.xlu0 %2828
  %vm2830 = vcmask 72752
  %2831 = vst.msk [vmem:[%s1] sm:$0x1f] %vm2830, %v2829
  %s2832 = scalar_lea.vmem %s0, 87
  %v2833 = vld [vmem:[%s2832] sm:$0x1]
  %s2834 = scalar_lea.vmem %s0, 214
  %v2835 = vld [vmem:[%s2834] sm:$0x2]
  %vm2836 = vcmask 1041409
  %v2837 = vsel %vm2836, %v2835, %v2833
  %s2838 = scalar_lea.vmem %s0, 341
  %v2839 = vld [vmem:[%s2838] sm:$0x4]
  %vm2840 = vcmask 1042434
  %v2841 = vsel %vm2840, %v2839, %v2837
  %s2842 = scalar_lea.vmem %s0, 468
  %v2843 = vld [vmem:[%s2842] sm:$0x8]
  %vm2844 = vcmask 1043459
  %v2845 = vsel %vm2844, %v2843, %v2841
  %s2846 = scalar_lea.vmem %s0, 595
  %v2847 = vld [vmem:[%s2846] sm:$0x10]
  %vm2848 = vcmask 1044484
  %v2849 = vsel %vm2848, %v2847, %v2845
  %2850 = vrot.lane.b32.xlu0 %v2849, 5
  %v2851 = vpop.permute.xlu0 %2850
  %vm2852 = vcmask 64552
  %s2853 = scalar_lea.vmem %s1, 16
  %2854 = vst.msk [vmem:[%s2853] sm:$0x1f] %vm2852, %v2851
  %s2855 = scalar_lea.vmem %s0, 44
  %v2856 = vld [vmem:[%s2855] sm:$0x1]
  %s2857 = scalar_lea.vmem %s0, 171
  %v2858 = vld [vmem:[%s2857] sm:$0x2]
  %vm2859 = vcmask 1041409
  %v2860 = vsel %vm2859, %v2858, %v2856
  %s2861 = scalar_lea.vmem %s0, 298
  %v2862 = vld [vmem:[%s2861] sm:$0x4]
  %vm2863 = vcmask 1042434
  %v2864 = vsel %vm2863, %v2862, %v2860
  %s2865 = scalar_lea.vmem %s0, 425
  %v2866 = vld [vmem:[%s2865] sm:$0x8]
  %vm2867 = vcmask 1043459
  %v2868 = vsel %vm2867, %v2866, %v2864
  %s2869 = scalar_lea.vmem %s0, 552
  %v2870 = vld [vmem:[%s2869] sm:$0x10]
  %vm2871 = vcmask 1044484
  %v2872 = vsel %vm2871, %v2870, %v2868
  %2873 = vrot.lane.b32.xlu0 %v2872, 4
  %v2874 = vpop.permute.xlu0 %2873
  %vm2875 = vcmask 56352
  %s2876 = scalar_lea.vmem %s1, 8
  %2877 = vst.msk [vmem:[%s2876] sm:$0x1f] %vm2875, %v2874
  %s2878 = scalar_lea.vmem %s0, 1
  %v2879 = vld [vmem:[%s2878] sm:$0x1]
  %s2880 = scalar_lea.vmem %s0, 128
  %v2881 = vld [vmem:[%s2880] sm:$0x2]
  %vm2882 = vcmask 1041409
  %v2883 = vsel %vm2882, %v2881, %v2879
  %s2884 = scalar_lea.vmem %s0, 255
  %v2885 = vld [vmem:[%s2884] sm:$0x4]
  %vm2886 = vcmask 1042434
  %v2887 = vsel %vm2886, %v2885, %v2883
  %s2888 = scalar_lea.vmem %s0, 382
  %v2889 = vld [vmem:[%s2888] sm:$0x8]
  %vm2890 = vcmask 1043459
  %v2891 = vsel %vm2890, %v2889, %v2887
  %s2892 = scalar_lea.vmem %s0, 509
  %v2893 = vld [vmem:[%s2892] sm:$0x10]
  %vm2894 = vcmask 1044484
  %v2895 = vsel %vm2894, %v2893, %v2891
  %2896 = vrot.lane.b32.xlu0 %v2895, 3
  %v2897 = vpop.permute.xlu0 %2896
  %vm2898 = vcmask 48152
  %2899 = vst.msk [vmem:[%s1] sm:$0x1f] %vm2898, %v2897
  %s2900 = scalar_lea.vmem %s0, 86
  %v2901 = vld [vmem:[%s2900] sm:$0x1]
  %s2902 = scalar_lea.vmem %s0, 213
  %v2903 = vld [vmem:[%s2902] sm:$0x2]
  %vm2904 = vcmask 1041409
  %v2905 = vsel %vm2904, %v2903, %v2901
  %s2906 = scalar_lea.vmem %s0, 340
  %v2907 = vld [vmem:[%s2906] sm:$0x4]
  %vm2908 = vcmask 1042434
  %v2909 = vsel %vm2908, %v2907, %v2905
  %s2910 = scalar_lea.vmem %s0, 467
  %v2911 = vld [vmem:[%s2910] sm:$0x8]
  %vm2912 = vcmask 1043459
  %v2913 = vsel %vm2912, %v2911, %v2909
  %s2914 = scalar_lea.vmem %s0, 594
  %v2915 = vld [vmem:[%s2914] sm:$0x10]
  %vm2916 = vcmask 1044484
  %v2917 = vsel %vm2916, %v2915, %v2913
  %2918 = vrot.lane.b32.xlu0 %v2917, 2
  %v2919 = vpop.permute.xlu0 %2918
  %vm2920 = vcmask 39952
  %s2921 = scalar_lea.vmem %s1, 16
  %2922 = vst.msk [vmem:[%s2921] sm:$0x1f] %vm2920, %v2919
  %s2923 = scalar_lea.vmem %s0, 43
  %v2924 = vld [vmem:[%s2923] sm:$0x1]
  %s2925 = scalar_lea.vmem %s0, 170
  %v2926 = vld [vmem:[%s2925] sm:$0x2]
  %vm2927 = vcmask 1041409
  %v2928 = vsel %vm2927, %v2926, %v2924
  %s2929 = scalar_lea.vmem %s0, 297
  %v2930 = vld [vmem:[%s2929] sm:$0x4]
  %vm2931 = vcmask 1042434
  %v2932 = vsel %vm2931, %v2930, %v2928
  %s2933 = scalar_lea.vmem %s0, 424
  %v2934 = vld [vmem:[%s2933] sm:$0x8]
  %vm2935 = vcmask 1043459
  %v2936 = vsel %vm2935, %v2934, %v2932
  %s2937 = scalar_lea.vmem %s0, 551
  %v2938 = vld [vmem:[%s2937] sm:$0x10]
  %vm2939 = vcmask 1044484
  %v2940 = vsel %vm2939, %v2938, %v2936
  %2941 = vrot.lane.b32.xlu0 %v2940, 1
  %v2942 = vpop.permute.xlu0 %2941
  %vm2943 = vcmask 31752
  %s2944 = scalar_lea.vmem %s1, 8
  %2945 = vst.msk [vmem:[%s2944] sm:$0x1f] %vm2943, %v2942

// kernel: random_shear.1
$region0: #{random_shear.1}
  #allocation0 [shape = 'u32[]', space=smem, size = 0x4, offset = 0x4, fixed_abs, tag = 'smem constant byte address 0x4 - core index']
  #allocation1 [shape = 'u32[144,128]{1,0:T(1,128)}', space=vmem, size = 0x12000, scoped, tag = 'internal scratch']
  %s0 = inlined_call_operand.vmem [shape: f32[5,384], index: 0, kind: input, shape index: {}]
  %s1 = inlined_call_operand.vmem [shape: f32[2,384], index: 1, kind: input, shape index: {}]
  %s2 = inlined_call_operand.vmem [shape: f32[2,384], index: 2, kind: output, shape index: {}]
  %s3 = sld [smem:[#allocation0]]
  $region18: #{random_shear.1} parent=0
    _
  %s5 = ssub.s32 1, %s3
  %s6 = scalar_select 0, %s5, %s3
  // Predicated region
  $region2: #{random_shear.1} parent=0 // pred_check
    _
  $region3: #{random_shear.1} parent=0 // pred_check_branch
    %8 = sbr.rel (0) target = $region5
  $region4: #{random_shear.1} parent=0 // pred_region
    _
  $region5: #{random_shear.1} parent=0 // pred_fallthru
    _
  // Predicated region
  $region6: #{random_shear.1} parent=0 // pred_check
    _
  $region7: #{random_shear.1} parent=0 // pred_check_branch
    %10 = sbr.rel (0) target = $region9
  $region8: #{random_shear.1} parent=0 // pred_region
    _
  $region9: #{random_shear.1} parent=0 // pred_fallthru
    _
  %v11 = vld [vmem:[%s1] sm:$0x3f]
  %v12 = vld [vmem:[%s0] sm:$0x1f]
  %v13 = vld [vmem:[%s0 + $0x8] sm:$0x1f]
  %v14 = vld [vmem:[%s0 + $0x10] sm:$0x1f]
  %v15 = vlaneseq
  %v16 = vshrl.u32 %v15, 7
  %v17 = vsub.s32 2, %v16
  %v18 = vrot.slane %v12, %v17
  %v19 = vlaneseq
  %v20 = vshrl.u32 %v19, 7
  %v21 = vsub.s32 2, %v20
  %v22 = vrot.slane %v13, %v21
  %v23 = vlaneseq
  %v24 = vshrl.u32 %v23, 7
  %v25 = vsub.s32 2, %v24
  %v26 = vrot.slane %v14, %v25
  %v28 = vcombine.high %v11, %v11
  %v30 = vunpack.c.l.s4 1983009808
  %v31 = vunpack.c.0.s8 %v30
  %v32 = vlaneseq
  %v33 = vshrl.u32 %v32, 7
  %v34 = vsub.s32 %v31, %v33
  %v35 = vrot.slane %v11, %v34
  %v37 = vunpack.c.l.s4 1983009808
  %v38 = vunpack.c.0.s8 %v37
  %v39 = vlaneseq
  %v40 = vshrl.u32 %v39, 7
  %v41 = vsub.s32 %v38, %v40
  %v42 = vrot.slane %v28, %v41
  %v43 = vcombine.high %v35, %v35
  %v47 = vmul.f32 %v18, %v35
  %v48 = vmul.f32 %v22, %v43
  %v49 = vmul.f32 %v26, %v42
  %50 = vrot.lane.b32.xlu0 %v35, 1
  %v51 = vpop.permute.xlu0 %50
  %52 = vrot.lane.b32.xlu0 %v43, 1
  %v53 = vpop.permute.xlu0 %52
  %54 = vrot.lane.b32.xlu0 %v42, 1
  %v55 = vpop.permute.xlu0 %54
  %v56 = vlaneseq
  %v57 = vand.u32 %v56, 127
  %vm58 = vcmp.lt.s32.totalorder %v57, 1
  %v59 = vsel %vm58, %v53, %v55
  %v60 = vsel %vm58, %v51, %v53
  %v61 = vsel %vm58, %v55, %v51
  %v62 = vlaneseq
  %v63 = vshrl.u32 %v62, 7
  %v64 = vsub.s32 1, %v63
  %v65 = vrot.slane %v12, %v64
  %v66 = vlaneseq
  %v67 = vshrl.u32 %v66, 7
  %v68 = vsub.s32 1, %v67
  %v69 = vrot.slane %v13, %v68
  %v70 = vlaneseq
  %v71 = vshrl.u32 %v70, 7
  %v72 = vsub.s32 1, %v71
  %v73 = vrot.slane %v14, %v72
  %v74 = vmul.f32 %v65, %v61
  %v75 = vmul.f32 %v69, %v60
  %v76 = vmul.f32 %v73, %v59
  %v77 = vadd.f32 %v47, %v74
  %v78 = vadd.f32 %v48, %v75
  %v79 = vadd.f32 %v49, %v76
  %80 = vrot.lane.b32.xlu0 %v35, 2
  %v81 = vpop.permute.xlu0 %80
  %82 = vrot.lane.b32.xlu0 %v43, 2
  %v83 = vpop.permute.xlu0 %82
  %84 = vrot.lane.b32.xlu0 %v42, 2
  %v85 = vpop.permute.xlu0 %84
  %vm86 = vcmp.lt.s32.totalorder %v57, 2
  %v87 = vsel %vm86, %v83, %v85
  %v88 = vsel %vm86, %v81, %v83
  %v89 = vsel %vm86, %v85, %v81
  %v90 = vlaneseq
  %v91 = vshrl.u32 %v90, 7
  %v92 = vsub.s32 0, %v91
  %v93 = vrot.slane %v12, %v92
  %v94 = vlaneseq
  %v95 = vshrl.u32 %v94, 7
  %v96 = vsub.s32 0, %v95
  %v97 = vrot.slane %v13, %v96
  %v98 = vlaneseq
  %v99 = vshrl.u32 %v98, 7
  %v100 = vsub.s32 0, %v99
  %v101 = vrot.slane %v14, %v100
  %v102 = vmul.f32 %v93, %v89
  %v103 = vmul.f32 %v97, %v88
  %v104 = vmul.f32 %v101, %v87
  %v105 = vadd.f32 %v77, %v102
  %v106 = vadd.f32 %v78, %v103
  %v107 = vadd.f32 %v79, %v104
  %108 = vrot.lane.b32.xlu0 %v35, 127
  %v109 = vpop.permute.xlu0 %108
  %110 = vrot.lane.b32.xlu0 %v43, 127
  %v111 = vpop.permute.xlu0 %110
  %112 = vrot.lane.b32.xlu0 %v42, 127
  %v113 = vpop.permute.xlu0 %112
  %vm114 = vcmp.lt.s32.totalorder %v57, 127
  %v115 = vsel %vm114, %v111, %v113
  %v116 = vsel %vm114, %v109, %v111
  %v117 = vsel %vm114, %v113, %v109
  %v118 = vlaneseq
  %v119 = vshrl.u32 %v118, 7
  %v120 = vsub.s32 3, %v119
  %v121 = vrot.slane %v12, %v120
  %v122 = vlaneseq
  %v123 = vshrl.u32 %v122, 7
  %v124 = vsub.s32 3, %v123
  %v125 = vrot.slane %v13, %v124
  %v126 = vlaneseq
  %v127 = vshrl.u32 %v126, 7
  %v128 = vsub.s32 3, %v127
  %v129 = vrot.slane %v14, %v128
  %v130 = vmul.f32 %v121, %v116
  %v131 = vmul.f32 %v125, %v115
  %v132 = vmul.f32 %v129, %v117
  %v133 = vadd.f32 %v105, %v130
  %v134 = vadd.f32 %v106, %v131
  %v135 = vadd.f32 %v107, %v132
  %136 = vrot.lane.b32.xlu0 %v35, 126
  %v137 = vpop.permute.xlu0 %136
  %138 = vrot.lane.b32.xlu0 %v43, 126
  %v139 = vpop.permute.xlu0 %138
  %140 = vrot.lane.b32.xlu0 %v42, 126
  %v141 = vpop.permute.xlu0 %140
  %vm142 = vcmp.lt.s32.totalorder %v57, 126
  %v143 = vsel %vm142, %v139, %v141
  %v144 = vsel %vm142, %v137, %v139
  %v145 = vsel %vm142, %v141, %v137
  %v146 = vlaneseq
  %v147 = vshrl.u32 %v146, 7
  %v148 = vsub.s32 4, %v147
  %v149 = vrot.slane %v12, %v148
  %v150 = vlaneseq
  %v151 = vshrl.u32 %v150, 7
  %v152 = vsub.s32 4, %v151
  %v153 = vrot.slane %v13, %v152
  %v154 = vlaneseq
  %v155 = vshrl.u32 %v154, 7
  %v156 = vsub.s32 4, %v155
  %v157 = vrot.slane %v14, %v156
  %v158 = vmul.f32 %v149, %v144
  %v159 = vmul.f32 %v153, %v143
  %v160 = vmul.f32 %v157, %v145
  %v161 = vadd.f32 %v133, %v158
  %v162 = vadd.f32 %v134, %v159
  %v163 = vadd.f32 %v135, %v160
  %v167 = vcombine.low %v161, %v162
  %v169 = vunpack.c.l.s4 1983009808
  %v170 = vunpack.c.0.s8 %v169
  %v171 = vlaneseq
  %v172 = vshrl.u32 %v171, 7
  %v173 = vsub.s32 %v170, %v172
  %v174 = vrot.slane %v167, %v173
  %v176 = vunpack.c.l.s4 1983009808
  %v177 = vunpack.c.0.s8 %v176
  %v178 = vlaneseq
  %v179 = vshrl.u32 %v178, 7
  %v180 = vsub.s32 %v177, %v179
  %v181 = vrot.slane %v163, %v180
  %v182 = vcombine.low %v174, %v181
  %184 = vst [vmem:[%s2] sm:$0x3f] %v182
  // Predicated region
  $region10: #{random_shear.1} parent=0 // pred_check
    _
  $region11: #{random_shear.1} parent=0 // pred_check_branch
    %186 = sbr.rel (0) target = $region13
  $region12: #{random_shear.1} parent=0 // pred_region
    _
  $region13: #{random_shear.1} parent=0 // pred_fallthru
    _
  // Predicated region
  $region14: #{random_shear.1} parent=0 // pred_check
    _
  $region15: #{random_shear.1} parent=0 // pred_check_branch
    %188 = sbr.rel (0) target = $region17
  $region16: #{random_shear.1} parent=0 // pred_region
    _
  $region17: #{random_shear.1} parent=0 // pred_fallthru
    _

</llo_original>
